<compile_context>
chip_gen: v7x
topology: tpu7x:2x2x1
jax: 0.10.0
libtpu: 0.0.40
codegen_flags: <defaults>
</compile_context>

<pallas_src>
import jax
import jax.numpy as jnp
from jax.experimental import pallas as pl
from jax.experimental.pallas import tpu as pltpu

LANE = 128


def _round_up(x, m):
    return ((x + m - 1) // m) * m


def _tpu_vmem_capacity_bytes():
    try:
        return int(pltpu.get_tpu_info().vmem_capacity_bytes)
    except Exception:
        return 64 * 1024 * 1024  # conservative fallback (v7x-sized)


_VMEM_CAP = _tpu_vmem_capacity_bytes()
if _VMEM_CAP >= 100 * (1 << 20):       # v5e / v6e: 128 MiB physical VMEM
    _VMEM_LIMIT_BYTES = 100 * (1 << 20)
    _DEFAULT_ROW_TILE = 512
else:                                   # v7x: 64 MiB physical VMEM
    _VMEM_LIMIT_BYTES = 48 * (1 << 20)
    _DEFAULT_ROW_TILE = 256


def _const_spec(shape):
    # Constant-index (grid-invariant) weight block: single-buffered.
    return pl.BlockSpec(shape, lambda i: (0, 0), pipeline_mode=pl.Buffered(1))


# ---------------------------------------------------------------------------
# Fused spatial MLP (MLPSpatialFilter, 'value_activation') + hoisted LSTM
# layer-0 input projection:  fc2 = MLP(x);  gates = fc2 @ W_ih0 + (b_ih0+b_hh0)
# ---------------------------------------------------------------------------
def spatial_kernel(x_ref,
                   w11, b11, w12, b12, w21, b21, w22, b22, w23, b23, wv, bv,
                   wih0, bg0,
                   fc2_ref, gates_ref):
    relu = lambda v: jnp.maximum(v, 0.0)

    def aff(a, w_ref, b_ref):
        # Cast LHS to the weight dtype (no-op for f32; bf16xbf16 MXU for bf16
        # params) and accumulate in f32.
        return (jnp.dot(a.astype(w_ref.dtype), w_ref[...],
                        preferred_element_type=jnp.float32)
                + b_ref[...].astype(jnp.float32))

    x = x_ref[...].astype(jnp.float32)
    # x = relu(fc12(relu(fc11(x))) + x)
    h1 = relu(aff(x, w11, b11))
    x1 = relu(aff(h1, w12, b12) + x)
    # x = relu(fc22(relu(fc21(x))) + fc23(x))
    h2 = relu(aff(x1, w21, b21))
    x2 = relu(aff(h2, w22, b22) + aff(x1, w23, b23))
    # fc2 = relu(value(x))
    fc2 = relu(aff(x2, wv, bv))
    fc2_ref[...] = fc2.astype(fc2_ref.dtype)
    # Hoisted LSTM layer-0 input GEMM (+ fused bias), lane-dense 4*Hp wide.
    gates_ref[...] = aff(fc2, wih0, bg0).astype(gates_ref.dtype)


def _spatial_cost(n, Sp, Hdp, GW):
    flops = 2 * n * (2 * Sp * Sp + 2 * Sp * Hdp + 2 * Hdp * Hdp + Hdp * GW)
    w_elems = 2 * Sp * Sp + 2 * Sp * Hdp + 2 * Hdp * Hdp + Hdp * GW
    bytes_accessed = 4 * (n * Sp + n * Hdp + w_elems) + 2 * n * GW
    return pl.CostEstimate(flops=flops, transcendentals=0,
                           bytes_accessed=bytes_accessed)


def spatial_forward(x_flat, prep, row_tile):
    n, Sp = x_flat.shape
    Hdp = prep["Hdp"]
    GW = prep["wih0"].shape[1]
    tm = n if n <= row_tile else row_tile
    n_pad = _round_up(n, tm)
    if n_pad != n:
        x_flat = jnp.pad(x_flat, ((0, n_pad - n), (0, 0)))

    weights = (prep["w11"], prep["b11"], prep["w12"], prep["b12"],
               prep["w21"], prep["b21"], prep["w22"], prep["b22"],
               prep["w23"], prep["b23"], prep["wv"], prep["bv"],
               prep["wih0"], prep["bg0"])

    in_specs = [pl.BlockSpec((tm, Sp), lambda i: (i, 0))]
    in_specs += [_const_spec(w.shape) for w in weights]
    out_specs = [pl.BlockSpec((tm, Hdp), lambda i: (i, 0)),
                 pl.BlockSpec((tm, GW), lambda i: (i, 0))]

    fc2, gates = pl.pallas_call(
        spatial_kernel,
        out_shape=(jax.ShapeDtypeStruct((n_pad, Hdp), jnp.float32),
                   jax.ShapeDtypeStruct((n_pad, GW), prep["gates_dtype"])),
        grid_spec=pltpu.PrefetchScalarGridSpec(
            num_scalar_prefetch=0,
            grid=(n_pad // tm,),
            in_specs=in_specs,
            out_specs=out_specs),
        compiler_params=pltpu.CompilerParams(
            dimension_semantics=("parallel",),   # row axis shards across TCs
            vmem_limit_bytes=_VMEM_LIMIT_BYTES),
        cost_estimate=_spatial_cost(n_pad, Sp, Hdp, GW),
    )(x_flat, *weights)
    return fc2[:n], gates[:n]


# ---------------------------------------------------------------------------
# Stacked LSTM (TemporalFilter, 'rnn'); layer-0 input GEMM already hoisted.
# Hidden lane-padded to Hp; gate blocks re-packed at lane offsets j*Hp.
# Upper layers use one fused GEMM: concat([x, h]) @ [Wih; Whh] + b.
# ---------------------------------------------------------------------------
def make_lstm_kernel(num_layers, Hp, chunk):
    def kernel(gates_ref, *refs):
        n_w = 1 + 2 * (num_layers - 1)
        w_refs = refs[:n_w]
        out_ref = refs[n_w]
        h_sc = refs[n_w + 1]          # (L, B, Hp) f32, carried across the grid
        c_sc = refs[n_w + 2]          # (L, B, Hp) f32

        whh0_ref = w_refs[0]
        upper_refs = [(w_refs[1 + 2 * j], w_refs[2 + 2 * j])
                      for j in range(num_layers - 1)]

        @pl.when(pl.program_id(0) == 0)
        def _():
            h_sc[...] = jnp.zeros_like(h_sc)
            c_sc[...] = jnp.zeros_like(c_sc)

        def cell(gates, c):
            # 128-aligned gate slices: free views, no cross-lane extracts.
            i = jax.nn.sigmoid(gates[:, 0 * Hp:1 * Hp])
            f = jax.nn.sigmoid(gates[:, 1 * Hp:2 * Hp])
            g = jnp.tanh(gates[:, 2 * Hp:3 * Hp])
            o = jax.nn.sigmoid(gates[:, 3 * Hp:4 * Hp])
            c_new = f * c + i * g
            h_new = o * jnp.tanh(c_new)
            return h_new, c_new

        # TODO(synk): at production Hp/chunk, switch to lax.fori_loop(unroll=True)
        # to bound vreg live ranges; static unroll is fine at chunk <= 8.
        for k in range(chunk):
            # layer 0: only the recurrence remains (input GEMM hoisted).
            h0 = h_sc[0]
            g0 = (gates_ref[:, k, :].astype(jnp.float32)
                  + jnp.dot(h0.astype(whh0_ref.dtype), whh0_ref[...],
                            preferred_element_type=jnp.float32))
            h_new, c_new = cell(g0, c_sc[0])
            h_sc[0] = h_new
            c_sc[0] = c_new
            xin = h_new
            for j, (wcat_ref, b_ref) in enumerate(upper_refs):
                l = j + 1
                xh = jnp.concatenate([xin, h_sc[l]], axis=-1)     # (B, 2Hp)
                gl = (jnp.dot(xh.astype(wcat_ref.dtype), wcat_ref[...],
                              preferred_element_type=jnp.float32)
                      + b_ref[...].astype(jnp.float32))
                h_new, c_new = cell(gl, c_sc[l])
                h_sc[l] = h_new
                c_sc[l] = c_new
                xin = h_new
            # lane-dense (B, Hp) store into the chunk's output slab.
            out_ref[:, k, :] = xin.astype(out_ref.dtype)

    return kernel


def _lstm_cost(B, T, L, Hp):
    GW = 4 * Hp
    flops = 2 * B * T * (Hp * GW + (L - 1) * 2 * Hp * GW)
    transcendentals = B * T * L * 5 * Hp
    w_elems = Hp * GW + (L - 1) * 2 * Hp * GW
    bytes_accessed = 2 * B * T * GW + 4 * (B * T * Hp + w_elems)
    return pl.CostEstimate(flops=flops, transcendentals=transcendentals,
                           bytes_accessed=bytes_accessed)


def lstm_forward(gates_btg, prep, time_chunk):
    """gates_btg: (B, T, 4*Hp) precomputed layer-0 input gates (+bias).
    Returns (B, T_pad, Hp); padded lanes / padded timesteps are discarded by caller."""
    B, T, GW = gates_btg.shape
    Hp = prep["Hp"]
    L = prep["rnn_layer"]
    C = min(time_chunk, T)
    T_pad = _round_up(T, C)
    if T_pad != T:
        gates_btg = jnp.pad(gates_btg, ((0, 0), (0, T_pad - T), (0, 0)))

    flat_w = [prep["whh0"]]
    in_specs = [pl.BlockSpec((B, C, GW), lambda t: (0, t, 0)),
                _const_spec(prep["whh0"].shape)]
    for (wcat, b) in prep["upper"]:
        flat_w += [wcat, b]
        in_specs += [_const_spec(wcat.shape), _const_spec(b.shape)]
    out_spec = pl.BlockSpec((B, C, Hp), lambda t: (0, t, 0))

    out = pl.pallas_call(
        make_lstm_kernel(L, Hp, C),
        out_shape=jax.ShapeDtypeStruct((B, T_pad, Hp), jnp.float32),
        grid_spec=pltpu.PrefetchScalarGridSpec(
            num_scalar_prefetch=0,
            grid=(T_pad // C,),
            in_specs=in_specs,
            out_specs=out_spec,
            scratch_shapes=[pltpu.VMEM((L, B, Hp), jnp.float32),
                            pltpu.VMEM((L, B, Hp), jnp.float32)]),
        compiler_params=pltpu.CompilerParams(
            # time axis carries h/c in scratch -> must stay sequential.
            dimension_semantics=("arbitrary",),
            vmem_limit_bytes=_VMEM_LIMIT_BYTES),
        cost_estimate=_lstm_cost(B, T_pad, L, Hp),
    )(gates_btg, *flat_w)
    return out


# ---------------------------------------------------------------------------
# One-time parameter preparation (lane padding + gate re-packing), hoisted out
# of the per-forward path.
# ---------------------------------------------------------------------------
def _pack_gate_cols(w, H, Hp):
    """(din, 4H) -> (din, 4Hp): gate block j at lane offset j*Hp, zeros elsewhere."""
    rows = w.shape[0]
    out = jnp.zeros((rows, 4 * Hp), w.dtype)
    for j in range(4):
        out = out.at[:, j * Hp:j * Hp + H].set(w[:, j * H:(j + 1) * H])
    return out


def _pad2(w, rows, cols):
    return jnp.pad(w, ((0, rows - w.shape[0]), (0, cols - w.shape[1])))


def prepare_params(spatial_params, lstm_params, num_sensor, hidden, num_source,
                   param_dtype=jnp.float32, gates_dtype=jnp.bfloat16):
    Sp = _round_up(num_sensor, LANE)
    Hdp = _round_up(hidden, LANE)
    Hp = _round_up(num_source, LANE)
    H = num_source
    sp = spatial_params
    cast = lambda a: a.astype(param_dtype)

    prep = {
        "Sp": Sp, "Hdp": Hdp, "Hp": Hp, "H": H, "hidden": hidden,
        "rnn_layer": len(lstm_params), "gates_dtype": gates_dtype,
        "w11": cast(_pad2(sp["w11"], Sp, Sp)), "b11": cast(_pad2(sp["b11"], 1, Sp)),
        "w12": cast(_pad2(sp["w12"], Sp, Sp)), "b12": cast(_pad2(sp["b12"], 1, Sp)),
        "w21": cast(_pad2(sp["w21"], Sp, Hdp)), "b21": cast(_pad2(sp["b21"], 1, Hdp)),
        "w22": cast(_pad2(sp["w22"], Hdp, Hdp)), "b22": cast(_pad2(sp["b22"], 1, Hdp)),
        "w23": cast(_pad2(sp["w23"], Sp, Hdp)), "b23": cast(_pad2(sp["b23"], 1, Hdp)),
        "wv": cast(_pad2(sp["wv"], Hdp, Hdp)), "bv": cast(_pad2(sp["bv"], 1, Hdp)),
    }
    wih0, whh0, b0 = lstm_params[0]
    prep["wih0"] = cast(_pad2(_pack_gate_cols(wih0, H, Hp), Hdp, 4 * Hp))
    prep["bg0"] = cast(_pack_gate_cols(b0, H, Hp))
    prep["whh0"] = cast(_pad2(_pack_gate_cols(whh0, H, Hp), Hp, 4 * Hp))
    upper = []
    for (wih, whh, b) in lstm_params[1:]:
        wcat = jnp.concatenate(
            [_pad2(_pack_gate_cols(wih, H, Hp), Hp, 4 * Hp),
             _pad2(_pack_gate_cols(whh, H, Hp), Hp, 4 * Hp)], axis=0)  # (2Hp, 4Hp)
        upper.append((cast(wcat), cast(_pack_gate_cols(b, H, Hp))))
    prep["upper"] = tuple(upper)
    return prep


# ---------------------------------------------------------------------------
# Full TemporalInverseNet forward (from prepared params)
# ---------------------------------------------------------------------------
def temporal_inverse_net_forward(x, prep, row_tile=None, time_chunk=8):
    if row_tile is None:
        row_tile = _DEFAULT_ROW_TILE
    B, T, S = x.shape
    Sp, hidden, H = prep["Sp"], prep["hidden"], prep["H"]
    if Sp != S:
        x = jnp.pad(x, ((0, 0), (0, 0), (0, Sp - S)))

    fc2_flat, gates_flat = spatial_forward(x.reshape(B * T, Sp), prep, row_tile)
    fc2 = fc2_flat[:, :hidden].reshape(B, T, hidden)
    gates_btg = gates_flat.reshape(B, T, gates_flat.shape[-1])

    last_padded = lstm_forward(gates_btg, prep, time_chunk)
    return {"fc2": fc2, "last": last_padded[:, :T, :H]}


# ---------------------------------------------------------------------------
# Deterministic parameter init + pure-JAX reference for validation
# ---------------------------------------------------------------------------
def _uniform(key, shape, fan_in):
    k = 1.0 / jnp.sqrt(jnp.asarray(fan_in, jnp.float32))
    return jax.random.uniform(key, shape, jnp.float32, -k, k)


def init_params(key, num_sensor, hidden, num_source, rnn_layer):
    keys = iter(jax.random.split(key, 64))
    sp = {}
    # Weights stored transposed (in, out), matching MLPSpatialFilter layers.
    for name, din, dout in [("11", num_sensor, num_sensor), ("12", num_sensor, num_sensor),
                            ("21", num_sensor, hidden), ("22", hidden, hidden),
                            ("23", num_sensor, hidden), ("v", hidden, hidden)]:
        sp["w" + name] = _uniform(next(keys), (din, dout), din)
        sp["b" + name] = _uniform(next(keys), (1, dout), din)
    lstm = []
    for l in range(rnn_layer):
        din = hidden if l == 0 else num_source
        wih = _uniform(next(keys), (din, 4 * num_source), num_source)
        whh = _uniform(next(keys), (num_source, 4 * num_source), num_source)
        b = (_uniform(next(keys), (1, 4 * num_source), num_source)
             + _uniform(next(keys), (1, 4 * num_source), num_source))  # b_ih + b_hh
        lstm.append((wih, whh, b))
    return sp, lstm


def reference_forward(x, sp, lstm, hidden, num_source):
    relu = lambda v: jnp.maximum(v, 0.0)
    B, T, S = x.shape
    xf = x.reshape(B * T, S)
    h1 = relu(xf @ sp["w11"] + sp["b11"])
    x1 = relu(h1 @ sp["w12"] + sp["b12"] + xf)
    h2 = relu(x1 @ sp["w21"] + sp["b21"])
    x2 = relu(h2 @ sp["w22"] + sp["b22"] + x1 @ sp["w23"] + sp["b23"])
    fc2 = relu(x2 @ sp["wv"] + sp["bv"]).reshape(B, T, hidden)

    out = fc2
    H = num_source
    for (wih, whh, b) in lstm:
        h = jnp.zeros((B, H), jnp.float32)
        c = jnp.zeros((B, H), jnp.float32)
        ys = []
        for t in range(T):
            gates = out[:, t] @ wih + h @ whh + b
            i = jax.nn.sigmoid(gates[:, :H])
            f = jax.nn.sigmoid(gates[:, H:2 * H])
            g = jnp.tanh(gates[:, 2 * H:3 * H])
            o = jax.nn.sigmoid(gates[:, 3 * H:])
            c = f * c + i * g
            h = o * jnp.tanh(c)
            ys.append(h)
        out = jnp.stack(ys, axis=1)
    return {"fc2": fc2, "last": out}


if __name__ == "__main__":
    # Small, module-consistent shapes:
    #   num_sensor=16, temporal_input_size (spatial hidden)=32, num_source=32,
    #   rnn_layer=3, batch=2, seq=8.   x: (batch, seq, num_sensor)
    B, T = 2, 8
    num_sensor, hidden, num_source, rnn_layer = 16, 32, 32, 3

    key = jax.random.PRNGKey(0)
    kx, kp = jax.random.split(key)
    x = jax.random.normal(kx, (B, T, num_sensor), jnp.float32)
    spatial_params, lstm_params = init_params(kp, num_sensor, hidden, num_source, rnn_layer)

    # One-time parameter packing (production: param_dtype=jnp.bfloat16).
    prep = prepare_params(spatial_params, lstm_params, num_sensor, hidden, num_source,
                          param_dtype=jnp.float32, gates_dtype=jnp.bfloat16)

    out = temporal_inverse_net_forward(x, prep, time_chunk=8)
    jax.block_until_ready(out["last"])

    ref = reference_forward(x, spatial_params, lstm_params, hidden, num_source)
    assert out["fc2"].shape == (B, T, hidden)
    assert out["last"].shape == (B, T, num_source)
    assert jnp.allclose(out["fc2"], ref["fc2"], atol=1e-3, rtol=1e-3)
    # 'last' tolerance accounts for the bf16 gates intermediate (HBM-traffic opt).
    assert jnp.allclose(out["last"], ref["last"], atol=2e-2, rtol=1e-2)

    print("KERNEL_OK")
</pallas_src>

<mosaic_0001>
module attributes {stable_mosaic.version = 11 : i64} {
  func.func @spatial_kernel(%arg0: i32, %arg1: memref<16x128xf32, #tpu.memory_space<vmem>>, %arg2: memref<128x128xf32, #tpu.memory_space<vmem>>, %arg3: memref<1x128xf32, #tpu.memory_space<vmem>>, %arg4: memref<128x128xf32, #tpu.memory_space<vmem>>, %arg5: memref<1x128xf32, #tpu.memory_space<vmem>>, %arg6: memref<128x128xf32, #tpu.memory_space<vmem>>, %arg7: memref<1x128xf32, #tpu.memory_space<vmem>>, %arg8: memref<128x128xf32, #tpu.memory_space<vmem>>, %arg9: memref<1x128xf32, #tpu.memory_space<vmem>>, %arg10: memref<128x128xf32, #tpu.memory_space<vmem>>, %arg11: memref<1x128xf32, #tpu.memory_space<vmem>>, %arg12: memref<128x128xf32, #tpu.memory_space<vmem>>, %arg13: memref<1x128xf32, #tpu.memory_space<vmem>>, %arg14: memref<128x512xf32, #tpu.memory_space<vmem>>, %arg15: memref<1x512xf32, #tpu.memory_space<vmem>>, %arg16: memref<16x128xf32, #tpu.memory_space<vmem>>, %arg17: memref<16x512xbf16, #tpu.memory_space<vmem>>) attributes {dimension_semantics = [#tpu.dimension_semantics<parallel>], iteration_bounds = array<i64: 1>, scalar_prefetch = 0 : i64, scratch_operands = 0 : i64, tpu.core_type = #tpu.core_type<tc>, window_params = [{transform_indices = @transform_0, window_bounds = array<i64: 16, 128>}, {pipeline_mode = #tpu.pipeline_mode<synchronous>, transform_indices = @transform_1, window_bounds = array<i64: 128, 128>}, {pipeline_mode = #tpu.pipeline_mode<synchronous>, transform_indices = @transform_2, window_bounds = array<i64: 1, 128>}, {pipeline_mode = #tpu.pipeline_mode<synchronous>, transform_indices = @transform_3, window_bounds = array<i64: 128, 128>}, {pipeline_mode = #tpu.pipeline_mode<synchronous>, transform_indices = @transform_4, window_bounds = array<i64: 1, 128>}, {pipeline_mode = #tpu.pipeline_mode<synchronous>, transform_indices = @transform_5, window_bounds = array<i64: 128, 128>}, {pipeline_mode = #tpu.pipeline_mode<synchronous>, transform_indices = @transform_6, window_bounds = array<i64: 1, 128>}, {pipeline_mode = #tpu.pipeline_mode<synchronous>, transform_indices = @transform_7, window_bounds = array<i64: 128, 128>}, {pipeline_mode = #tpu.pipeline_mode<synchronous>, transform_indices = @transform_8, window_bounds = array<i64: 1, 128>}, {pipeline_mode = #tpu.pipeline_mode<synchronous>, transform_indices = @transform_9, window_bounds = array<i64: 128, 128>}, {pipeline_mode = #tpu.pipeline_mode<synchronous>, transform_indices = @transform_10, window_bounds = array<i64: 1, 128>}, {pipeline_mode = #tpu.pipeline_mode<synchronous>, transform_indices = @transform_11, window_bounds = array<i64: 128, 128>}, {pipeline_mode = #tpu.pipeline_mode<synchronous>, transform_indices = @transform_12, window_bounds = array<i64: 1, 128>}, {pipeline_mode = #tpu.pipeline_mode<synchronous>, transform_indices = @transform_13, window_bounds = array<i64: 128, 512>}, {pipeline_mode = #tpu.pipeline_mode<synchronous>, transform_indices = @transform_14, window_bounds = array<i64: 1, 512>}, {transform_indices = @transform_15, window_bounds = array<i64: 16, 128>}, {transform_indices = @transform_16, window_bounds = array<i64: 16, 512>}]} {
    %c0 = arith.constant 0 : index
    %c0_0 = arith.constant 0 : index
    %0 = vector.load %arg1[%c0, %c0_0] : memref<16x128xf32, #tpu.memory_space<vmem>>, vector<16x128xf32>
    %c0_1 = arith.constant 0 : index
    %c0_2 = arith.constant 0 : index
    %1 = vector.load %arg2[%c0_1, %c0_2] : memref<128x128xf32, #tpu.memory_space<vmem>>, vector<128x128xf32>
    %cst = arith.constant dense<0.000000e+00> : vector<16x128xf32>
    %2 = tpu.matmul %0, %1, %cst {dimension_numbers = #tpu.dot_dimension_numbers<[1], [0], [0], [1], [0, 0, 1, 1], [], []>} : vector<16x128xf32>, vector<128x128xf32>, vector<16x128xf32> -> vector<16x128xf32>
    %c0_3 = arith.constant 0 : index
    %c0_4 = arith.constant 0 : index
    %3 = vector.load %arg3[%c0_3, %c0_4] : memref<1x128xf32, #tpu.memory_space<vmem>>, vector<1x128xf32>
    %4 = vector.broadcast %3 : vector<1x128xf32> to vector<16x128xf32>
    %5 = arith.addf %2, %4 : vector<16x128xf32>
    %cst_5 = arith.constant 0.000000e+00 : f32
    %6 = vector.broadcast %cst_5 : f32 to vector<16x128xf32>
    %7 = arith.maximumf %5, %6 : vector<16x128xf32>
    %c0_6 = arith.constant 0 : index
    %c0_7 = arith.constant 0 : index
    %8 = vector.load %arg4[%c0_6, %c0_7] : memref<128x128xf32, #tpu.memory_space<vmem>>, vector<128x128xf32>
    %cst_8 = arith.constant dense<0.000000e+00> : vector<16x128xf32>
    %9 = tpu.matmul %7, %8, %cst_8 {dimension_numbers = #tpu.dot_dimension_numbers<[1], [0], [0], [1], [0, 0, 1, 1], [], []>} : vector<16x128xf32>, vector<128x128xf32>, vector<16x128xf32> -> vector<16x128xf32>
    %c0_9 = arith.constant 0 : index
    %c0_10 = arith.constant 0 : index
    %10 = vector.load %arg5[%c0_9, %c0_10] : memref<1x128xf32, #tpu.memory_space<vmem>>, vector<1x128xf32>
    %11 = vector.broadcast %10 : vector<1x128xf32> to vector<16x128xf32>
    %12 = arith.addf %9, %11 : vector<16x128xf32>
    %13 = arith.addf %12, %0 : vector<16x128xf32>
    %cst_11 = arith.constant 0.000000e+00 : f32
    %14 = vector.broadcast %cst_11 : f32 to vector<16x128xf32>
    %15 = arith.maximumf %13, %14 : vector<16x128xf32>
    %c0_12 = arith.constant 0 : index
    %c0_13 = arith.constant 0 : index
    %16 = vector.load %arg6[%c0_12, %c0_13] : memref<128x128xf32, #tpu.memory_space<vmem>>, vector<128x128xf32>
    %cst_14 = arith.constant dense<0.000000e+00> : vector<16x128xf32>
    %17 = tpu.matmul %15, %16, %cst_14 {dimension_numbers = #tpu.dot_dimension_numbers<[1], [0], [0], [1], [0, 0, 1, 1], [], []>} : vector<16x128xf32>, vector<128x128xf32>, vector<16x128xf32> -> vector<16x128xf32>
    %c0_15 = arith.constant 0 : index
    %c0_16 = arith.constant 0 : index
    %18 = vector.load %arg7[%c0_15, %c0_16] : memref<1x128xf32, #tpu.memory_space<vmem>>, vector<1x128xf32>
    %19 = vector.broadcast %18 : vector<1x128xf32> to vector<16x128xf32>
    %20 = arith.addf %17, %19 : vector<16x128xf32>
    %cst_17 = arith.constant 0.000000e+00 : f32
    %21 = vector.broadcast %cst_17 : f32 to vector<16x128xf32>
    %22 = arith.maximumf %20, %21 : vector<16x128xf32>
    %c0_18 = arith.constant 0 : index
    %c0_19 = arith.constant 0 : index
    %23 = vector.load %arg8[%c0_18, %c0_19] : memref<128x128xf32, #tpu.memory_space<vmem>>, vector<128x128xf32>
    %cst_20 = arith.constant dense<0.000000e+00> : vector<16x128xf32>
    %24 = tpu.matmul %22, %23, %cst_20 {dimension_numbers = #tpu.dot_dimension_numbers<[1], [0], [0], [1], [0, 0, 1, 1], [], []>} : vector<16x128xf32>, vector<128x128xf32>, vector<16x128xf32> -> vector<16x128xf32>
    %c0_21 = arith.constant 0 : index
    %c0_22 = arith.constant 0 : index
    %25 = vector.load %arg9[%c0_21, %c0_22] : memref<1x128xf32, #tpu.memory_space<vmem>>, vector<1x128xf32>
    %26 = vector.broadcast %25 : vector<1x128xf32> to vector<16x128xf32>
    %27 = arith.addf %24, %26 : vector<16x128xf32>
    %c0_23 = arith.constant 0 : index
    %c0_24 = arith.constant 0 : index
    %28 = vector.load %arg10[%c0_23, %c0_24] : memref<128x128xf32, #tpu.memory_space<vmem>>, vector<128x128xf32>
    %cst_25 = arith.constant dense<0.000000e+00> : vector<16x128xf32>
    %29 = tpu.matmul %15, %28, %cst_25 {dimension_numbers = #tpu.dot_dimension_numbers<[1], [0], [0], [1], [0, 0, 1, 1], [], []>} : vector<16x128xf32>, vector<128x128xf32>, vector<16x128xf32> -> vector<16x128xf32>
    %c0_26 = arith.constant 0 : index
    %c0_27 = arith.constant 0 : index
    %30 = vector.load %arg11[%c0_26, %c0_27] : memref<1x128xf32, #tpu.memory_space<vmem>>, vector<1x128xf32>
    %31 = vector.broadcast %30 : vector<1x128xf32> to vector<16x128xf32>
    %32 = arith.addf %29, %31 : vector<16x128xf32>
    %33 = arith.addf %27, %32 : vector<16x128xf32>
    %cst_28 = arith.constant 0.000000e+00 : f32
    %34 = vector.broadcast %cst_28 : f32 to vector<16x128xf32>
    %35 = arith.maximumf %33, %34 : vector<16x128xf32>
    %c0_29 = arith.constant 0 : index
    %c0_30 = arith.constant 0 : index
    %36 = vector.load %arg12[%c0_29, %c0_30] : memref<128x128xf32, #tpu.memory_space<vmem>>, vector<128x128xf32>
    %cst_31 = arith.constant dense<0.000000e+00> : vector<16x128xf32>
    %37 = tpu.matmul %35, %36, %cst_31 {dimension_numbers = #tpu.dot_dimension_numbers<[1], [0], [0], [1], [0, 0, 1, 1], [], []>} : vector<16x128xf32>, vector<128x128xf32>, vector<16x128xf32> -> vector<16x128xf32>
    %c0_32 = arith.constant 0 : index
    %c0_33 = arith.constant 0 : index
    %38 = vector.load %arg13[%c0_32, %c0_33] : memref<1x128xf32, #tpu.memory_space<vmem>>, vector<1x128xf32>
    %39 = vector.broadcast %38 : vector<1x128xf32> to vector<16x128xf32>
    %40 = arith.addf %37, %39 : vector<16x128xf32>
    %cst_34 = arith.constant 0.000000e+00 : f32
    %41 = vector.broadcast %cst_34 : f32 to vector<16x128xf32>
    %42 = arith.maximumf %40, %41 : vector<16x128xf32>
    %c0_35 = arith.constant 0 : index
    %c0_36 = arith.constant 0 : index
    %43 = vector.load %arg16[%c0_35, %c0_36] : memref<16x128xf32, #tpu.memory_space<vmem>>, vector<16x128xf32>
    tpu.vector_store %arg16[%c0_35, %c0_36], %42 {strides = array<i32>} : memref<16x128xf32, #tpu.memory_space<vmem>>, vector<16x128xf32>,
    %c0_37 = arith.constant 0 : index
    %c0_38 = arith.constant 0 : index
    %44 = vector.load %arg14[%c0_37, %c0_38] : memref<128x512xf32, #tpu.memory_space<vmem>>, vector<128x512xf32>
    %cst_39 = arith.constant dense<0.000000e+00> : vector<16x512xf32>
    %45 = tpu.matmul %42, %44, %cst_39 {dimension_numbers = #tpu.dot_dimension_numbers<[1], [0], [0], [1], [0, 0, 1, 1], [], []>} : vector<16x128xf32>, vector<128x512xf32>, vector<16x512xf32> -> vector<16x512xf32>
    %c0_40 = arith.constant 0 : index
    %c0_41 = arith.constant 0 : index
    %46 = vector.load %arg15[%c0_40, %c0_41] : memref<1x512xf32, #tpu.memory_space<vmem>>, vector<1x512xf32>
    %47 = vector.broadcast %46 : vector<1x512xf32> to vector<16x512xf32>
    %48 = arith.addf %45, %47 : vector<16x512xf32>
    %49 = arith.truncf %48 : vector<16x512xf32> to vector<16x512xbf16>
    %c0_42 = arith.constant 0 : index
    %c0_43 = arith.constant 0 : index
    %50 = vector.load %arg17[%c0_42, %c0_43] : memref<16x512xbf16, #tpu.memory_space<vmem>>, vector<16x512xbf16>
    tpu.vector_store %arg17[%c0_42, %c0_43], %49 {strides = array<i32>} : memref<16x512xbf16, #tpu.memory_space<vmem>>, vector<16x512xbf16>,
    return
  }
  func.func @transform_0(%arg0: i32) -> (i32, i32) {
    %c0_i32 = arith.constant 0 : i32
    %c0_i32_0 = arith.constant 0 : i32
    return %arg0, %c0_i32 : i32, i32
  }
  func.func @transform_1(%arg0: i32) -> (i32, i32) {
    %c0_i32 = arith.constant 0 : i32
    %c0_i32_0 = arith.constant 0 : i32
    %c0_i32_1 = arith.constant 0 : i32
    return %c0_i32, %c0_i32_0 : i32, i32
  }
  func.func @transform_2(%arg0: i32) -> (i32, i32) {
    %c0_i32 = arith.constant 0 : i32
    %c0_i32_0 = arith.constant 0 : i32
    %c0_i32_1 = arith.constant 0 : i32
    return %c0_i32, %c0_i32_0 : i32, i32
  }
  func.func @transform_3(%arg0: i32) -> (i32, i32) {
    %c0_i32 = arith.constant 0 : i32
    %c0_i32_0 = arith.constant 0 : i32
    %c0_i32_1 = arith.constant 0 : i32
    return %c0_i32, %c0_i32_0 : i32, i32
  }
  func.func @transform_4(%arg0: i32) -> (i32, i32) {
    %c0_i32 = arith.constant 0 : i32
    %c0_i32_0 = arith.constant 0 : i32
    %c0_i32_1 = arith.constant 0 : i32
    return %c0_i32, %c0_i32_0 : i32, i32
  }
  func.func @transform_5(%arg0: i32) -> (i32, i32) {
    %c0_i32 = arith.constant 0 : i32
    %c0_i32_0 = arith.constant 0 : i32
    %c0_i32_1 = arith.constant 0 : i32
    return %c0_i32, %c0_i32_0 : i32, i32
  }
  func.func @transform_6(%arg0: i32) -> (i32, i32) {
    %c0_i32 = arith.constant 0 : i32
    %c0_i32_0 = arith.constant 0 : i32
    %c0_i32_1 = arith.constant 0 : i32
    return %c0_i32, %c0_i32_0 : i32, i32
  }
  func.func @transform_7(%arg0: i32) -> (i32, i32) {
    %c0_i32 = arith.constant 0 : i32
    %c0_i32_0 = arith.constant 0 : i32
    %c0_i32_1 = arith.constant 0 : i32
    return %c0_i32, %c0_i32_0 : i32, i32
  }
  func.func @transform_8(%arg0: i32) -> (i32, i32) {
    %c0_i32 = arith.constant 0 : i32
    %c0_i32_0 = arith.constant 0 : i32
    %c0_i32_1 = arith.constant 0 : i32
    return %c0_i32, %c0_i32_0 : i32, i32
  }
  func.func @transform_9(%arg0: i32) -> (i32, i32) {
    %c0_i32 = arith.constant 0 : i32
    %c0_i32_0 = arith.constant 0 : i32
    %c0_i32_1 = arith.constant 0 : i32
    return %c0_i32, %c0_i32_0 : i32, i32
  }
  func.func @transform_10(%arg0: i32) -> (i32, i32) {
    %c0_i32 = arith.constant 0 : i32
    %c0_i32_0 = arith.constant 0 : i32
    %c0_i32_1 = arith.constant 0 : i32
    return %c0_i32, %c0_i32_0 : i32, i32
  }
  func.func @transform_11(%arg0: i32) -> (i32, i32) {
    %c0_i32 = arith.constant 0 : i32
    %c0_i32_0 = arith.constant 0 : i32
    %c0_i32_1 = arith.constant 0 : i32
    return %c0_i32, %c0_i32_0 : i32, i32
  }
  func.func @transform_12(%arg0: i32) -> (i32, i32) {
    %c0_i32 = arith.constant 0 : i32
    %c0_i32_0 = arith.constant 0 : i32
    %c0_i32_1 = arith.constant 0 : i32
    return %c0_i32, %c0_i32_0 : i32, i32
  }
  func.func @transform_13(%arg0: i32) -> (i32, i32) {
    %c0_i32 = arith.constant 0 : i32
    %c0_i32_0 = arith.constant 0 : i32
    %c0_i32_1 = arith.constant 0 : i32
    return %c0_i32, %c0_i32_0 : i32, i32
  }
  func.func @transform_14(%arg0: i32) -> (i32, i32) {
    %c0_i32 = arith.constant 0 : i32
    %c0_i32_0 = arith.constant 0 : i32
    %c0_i32_1 = arith.constant 0 : i32
    return %c0_i32, %c0_i32_0 : i32, i32
  }
  func.func @transform_15(%arg0: i32) -> (i32, i32) {
    %c0_i32 = arith.constant 0 : i32
    %c0_i32_0 = arith.constant 0 : i32
    return %arg0, %c0_i32 : i32, i32
  }
  func.func @transform_16(%arg0: i32) -> (i32, i32) {
    %c0_i32 = arith.constant 0 : i32
    %c0_i32_0 = arith.constant 0 : i32
    return %arg0, %c0_i32 : i32, i32
  }
}

</mosaic_0001>

<llo_original>
// kernel: tpu_custom_call.1
$region0: #{tpu_custom_call.1}
  #allocation0 [shape = 'u32[]', space=smem, size = 0x4, offset = 0x4, fixed_abs, tag = 'smem constant byte address 0x4 - core index']
  #allocation1 [shape = 'u32[144,128]{1,0:T(1,128)}', space=vmem, size = 0x12000, scoped, tag = 'internal scratch']
  %s0 = inlined_call_operand.hbm [shape: f32[16,128], index: 0, kind: input, shape index: {}]
  %s1 = inlined_call_operand.hbm [shape: f32[128,128], index: 1, kind: input, shape index: {}]
  %s2 = inlined_call_operand.vmem [shape: f32[1,128], index: 2, kind: input, shape index: {}]
  %s3 = inlined_call_operand.hbm [shape: f32[128,128], index: 3, kind: input, shape index: {}]
  %s4 = inlined_call_operand.vmem [shape: f32[1,128], index: 4, kind: input, shape index: {}]
  %s5 = inlined_call_operand.hbm [shape: f32[128,128], index: 5, kind: input, shape index: {}]
  %s6 = inlined_call_operand.vmem [shape: f32[1,128], index: 6, kind: input, shape index: {}]
  %s7 = inlined_call_operand.hbm [shape: f32[128,128], index: 7, kind: input, shape index: {}]
  %s8 = inlined_call_operand.vmem [shape: f32[1,128], index: 8, kind: input, shape index: {}]
  %s9 = inlined_call_operand.hbm [shape: f32[128,128], index: 9, kind: input, shape index: {}]
  %s10 = inlined_call_operand.vmem [shape: f32[1,128], index: 10, kind: input, shape index: {}]
  %s11 = inlined_call_operand.hbm [shape: f32[128,128], index: 11, kind: input, shape index: {}]
  %s12 = inlined_call_operand.vmem [shape: f32[1,128], index: 12, kind: input, shape index: {}]
  %s13 = inlined_call_operand.hbm [shape: f32[128,512], index: 13, kind: input, shape index: {}]
  %s14 = inlined_call_operand.vmem [shape: f32[1,512], index: 14, kind: input, shape index: {}]
  %s15 = inlined_call_operand.hbm [shape: f32[16,128], index: 15, kind: output, shape index: {0}]
  %s16 = inlined_call_operand.hbm [shape: bf16[16,512], index: 16, kind: output, shape index: {1}]
  %17 = xla_tuple %s15, %s16
  %s18 = sld [smem:[#allocation0]]
  $region110: #{tpu_custom_call.1} parent=0
    _
  %s20 = ssub.s32 1, %s18
  %s21 = scalar_select 0, %s20, %s18
  $region1: #{tpu_custom_call.1} parent=0
    #allocation2 [shape = 'u8[8192]{0}', space=vmem, size = 0x2000, scoped, tag = 'input window, operand 0, single buffered']
    #allocation3 [shape = 's32[1]{0}', space=sflag, size = 0x4, scoped, tag = 'scoped memory for tpu_custom_call.1']
    #allocation4 [shape = 's32[1]{0}', space=sflag, size = 0x4, scoped, tag = 'scoped memory for tpu_custom_call.1']
    #allocation5 [shape = 'u8[65536]{0}', space=vmem, size = 0x10000, scoped, tag = 'input window, operand 1, single buffered']
    #allocation6 [shape = 's32[1]{0}', space=sflag, size = 0x4, scoped, tag = 'scoped memory for tpu_custom_call.1']
    #allocation7 [shape = 'u8[65536]{0}', space=vmem, size = 0x10000, scoped, tag = 'input window, operand 3, single buffered']
    #allocation8 [shape = 'u8[65536]{0}', space=vmem, size = 0x10000, scoped, tag = 'input window, operand 5, single buffered']
    #allocation9 [shape = 's32[1]{0}', space=sflag, size = 0x4, scoped, tag = 'scoped memory for tpu_custom_call.1']
    #allocation10 [shape = 'u8[65536]{0}', space=vmem, size = 0x10000, scoped, tag = 'input window, operand 7, single buffered']
    #allocation11 [shape = 'u8[65536]{0}', space=vmem, size = 0x10000, scoped, tag = 'input window, operand 9, single buffered']
    #allocation12 [shape = 's32[1]{0}', space=sflag, size = 0x4, scoped, tag = 'scoped memory for tpu_custom_call.1']
    #allocation13 [shape = 'u8[65536]{0}', space=vmem, size = 0x10000, scoped, tag = 'input window, operand 11, single buffered']
    #allocation14 [shape = 'u8[262144]{0}', space=vmem, size = 0x40000, scoped, tag = 'input window, operand 13, single buffered']
    #allocation15 [shape = 's32[1]{0}', space=sflag, size = 0x4, scoped, tag = 'scoped memory for tpu_custom_call.1']
    #allocation16 [shape = 'u8[8192]{0}', space=vmem, size = 0x2000, scoped, tag = 'output window, operand 0, single buffered']
    #allocation17 [shape = 'u8[16384]{0}', space=vmem, size = 0x4000, scoped, tag = 'output window, operand 1, single buffered']
    #allocation18 [shape = 's32[1]{0}', space=sflag, size = 0x4, scoped, tag = 'scoped memory for tpu_custom_call.1']
    %22 = vsyncpa [#allocation3], 0
    %23 = vsyncpa [#allocation6], 0
    %24 = vsyncpa [#allocation9], 0
    %25 = vsyncpa [#allocation12], 0
    %26 = vsyncpa [#allocation15], 0
    %27 = vsyncpa [#allocation4], 0
    %28 = vsyncpa [#allocation18], 0
    // Predicated region
    $region2: #{tpu_custom_call.1} parent=1 // pred_check
      _
    $region3: #{tpu_custom_call.1} parent=1 // pred_check_branch
      %30 = sbr.rel (0) target = $region5
    $region4: #{tpu_custom_call.1} parent=1 // pred_region
      %s32 = ssub.s32 256, 256
      %33 = vsyncadd [#allocation3], %s32
      %s34 = sshll.u32 [#allocation2], 4
      %s35 = int_to_ptr.vmem [resolvable:$true] %s34
      %40 = dma.hbm_to_vmem [thread:$0]  %s0, 256, %s35, [#allocation3], 128, 128, 8
    $region5: #{tpu_custom_call.1} parent=1 // pred_fallthru
      _
    // Predicated region
    $region6: #{tpu_custom_call.1} parent=1 // pred_check
      _
    $region7: #{tpu_custom_call.1} parent=1 // pred_check_branch
      %42 = sbr.rel (0) target = $region9
    $region8: #{tpu_custom_call.1} parent=1 // pred_region
      %s44 = ssub.s32 2048, 2048
      %45 = vsyncadd [#allocation6], %s44
      %s46 = sshll.u32 [#allocation5], 4
      %s47 = int_to_ptr.vmem [resolvable:$true] %s46
      %52 = dma.hbm_to_vmem [thread:$0]  %s1, 2048, %s47, [#allocation6], 128, 128, 8
    $region9: #{tpu_custom_call.1} parent=1 // pred_fallthru
      _
    // Predicated region
    $region10: #{tpu_custom_call.1} parent=1 // pred_check
      _
    $region11: #{tpu_custom_call.1} parent=1 // pred_check_branch
      %54 = sbr.rel (0) target = $region13
    $region12: #{tpu_custom_call.1} parent=1 // pred_region
      _
    $region13: #{tpu_custom_call.1} parent=1 // pred_fallthru
      _
    // Predicated region
    $region14: #{tpu_custom_call.1} parent=1 // pred_check
      _
    $region15: #{tpu_custom_call.1} parent=1 // pred_check_branch
      %56 = sbr.rel (0) target = $region17
    $region16: #{tpu_custom_call.1} parent=1 // pred_region
      %s58 = ssub.s32 2048, 2048
      %59 = vsyncadd [#allocation6], %s58
      %s60 = sshll.u32 [#allocation7], 4
      %s61 = int_to_ptr.vmem [resolvable:$true] %s60
      %66 = dma.hbm_to_vmem [thread:$0]  %s3, 2048, %s61, [#allocation6], 128, 128, 8
    $region17: #{tpu_custom_call.1} parent=1 // pred_fallthru
      _
    // Predicated region
    $region18: #{tpu_custom_call.1} parent=1 // pred_check
      _
    $region19: #{tpu_custom_call.1} parent=1 // pred_check_branch
      %68 = sbr.rel (0) target = $region21
    $region20: #{tpu_custom_call.1} parent=1 // pred_region
      _
    $region21: #{tpu_custom_call.1} parent=1 // pred_fallthru
      _
    // Predicated region
    $region22: #{tpu_custom_call.1} parent=1 // pred_check
      _
    $region23: #{tpu_custom_call.1} parent=1 // pred_check_branch
      %70 = sbr.rel (0) target = $region25
    $region24: #{tpu_custom_call.1} parent=1 // pred_region
      %s72 = ssub.s32 2048, 2048
      %73 = vsyncadd [#allocation9], %s72
      %s74 = sshll.u32 [#allocation8], 4
      %s75 = int_to_ptr.vmem [resolvable:$true] %s74
      %80 = dma.hbm_to_vmem [thread:$0]  %s5, 2048, %s75, [#allocation9], 128, 128, 8
    $region25: #{tpu_custom_call.1} parent=1 // pred_fallthru
      _
    // Predicated region
    $region26: #{tpu_custom_call.1} parent=1 // pred_check
      _
    $region27: #{tpu_custom_call.1} parent=1 // pred_check_branch
      %82 = sbr.rel (0) target = $region29
    $region28: #{tpu_custom_call.1} parent=1 // pred_region
      _
    $region29: #{tpu_custom_call.1} parent=1 // pred_fallthru
      _
    // Predicated region
    $region30: #{tpu_custom_call.1} parent=1 // pred_check
      _
    $region31: #{tpu_custom_call.1} parent=1 // pred_check_branch
      %84 = sbr.rel (0) target = $region33
    $region32: #{tpu_custom_call.1} parent=1 // pred_region
      %s86 = ssub.s32 2048, 2048
      %87 = vsyncadd [#allocation9], %s86
      %s88 = sshll.u32 [#allocation10], 4
      %s89 = int_to_ptr.vmem [resolvable:$true] %s88
      %94 = dma.hbm_to_vmem [thread:$0]  %s7, 2048, %s89, [#allocation9], 128, 128, 8
    $region33: #{tpu_custom_call.1} parent=1 // pred_fallthru
      _
    // Predicated region
    $region34: #{tpu_custom_call.1} parent=1 // pred_check
      _
    $region35: #{tpu_custom_call.1} parent=1 // pred_check_branch
      %96 = sbr.rel (0) target = $region37
    $region36: #{tpu_custom_call.1} parent=1 // pred_region
      _
    $region37: #{tpu_custom_call.1} parent=1 // pred_fallthru
      _
    // Predicated region
    $region38: #{tpu_custom_call.1} parent=1 // pred_check
      _
    $region39: #{tpu_custom_call.1} parent=1 // pred_check_branch
      %98 = sbr.rel (0) target = $region41
    $region40: #{tpu_custom_call.1} parent=1 // pred_region
      %s100 = ssub.s32 2048, 2048
      %101 = vsyncadd [#allocation12], %s100
      %s102 = sshll.u32 [#allocation11], 4
      %s103 = int_to_ptr.vmem [resolvable:$true] %s102
      %108 = dma.hbm_to_vmem [thread:$0]  %s9, 2048, %s103, [#allocation12], 128, 128, 8
    $region41: #{tpu_custom_call.1} parent=1 // pred_fallthru
      _
    // Predicated region
    $region42: #{tpu_custom_call.1} parent=1 // pred_check
      _
    $region43: #{tpu_custom_call.1} parent=1 // pred_check_branch
      %110 = sbr.rel (0) target = $region45
    $region44: #{tpu_custom_call.1} parent=1 // pred_region
      _
    $region45: #{tpu_custom_call.1} parent=1 // pred_fallthru
      _
    // Predicated region
    $region46: #{tpu_custom_call.1} parent=1 // pred_check
      _
    $region47: #{tpu_custom_call.1} parent=1 // pred_check_branch
      %112 = sbr.rel (0) target = $region49
    $region48: #{tpu_custom_call.1} parent=1 // pred_region
      %s114 = ssub.s32 2048, 2048
      %115 = vsyncadd [#allocation12], %s114
      %s116 = sshll.u32 [#allocation13], 4
      %s117 = int_to_ptr.vmem [resolvable:$true] %s116
      %122 = dma.hbm_to_vmem [thread:$0]  %s11, 2048, %s117, [#allocation12], 128, 128, 8
    $region49: #{tpu_custom_call.1} parent=1 // pred_fallthru
      _
    // Predicated region
    $region50: #{tpu_custom_call.1} parent=1 // pred_check
      _
    $region51: #{tpu_custom_call.1} parent=1 // pred_check_branch
      %124 = sbr.rel (0) target = $region53
    $region52: #{tpu_custom_call.1} parent=1 // pred_region
      _
    $region53: #{tpu_custom_call.1} parent=1 // pred_fallthru
      _
    // Predicated region
    $region54: #{tpu_custom_call.1} parent=1 // pred_check
      _
    $region55: #{tpu_custom_call.1} parent=1 // pred_check_branch
      %126 = sbr.rel (0) target = $region57
    $region56: #{tpu_custom_call.1} parent=1 // pred_region
      %s128 = ssub.s32 8192, 8192
      %129 = vsyncadd [#allocation15], %s128
      %s130 = sshll.u32 [#allocation14], 4
      %s131 = int_to_ptr.vmem [resolvable:$true] %s130
      %136 = dma.hbm_to_vmem [thread:$0]  %s13, 8192, %s131, [#allocation15], 512, 512, 32
    $region57: #{tpu_custom_call.1} parent=1 // pred_fallthru
      _
    // Predicated region
    $region58: #{tpu_custom_call.1} parent=1 // pred_check
      _
    $region59: #{tpu_custom_call.1} parent=1 // pred_check_branch
      %138 = sbr.rel (0) target = $region61
    $region60: #{tpu_custom_call.1} parent=1 // pred_region
      _
    $region61: #{tpu_custom_call.1} parent=1 // pred_fallthru
      _
    // Predicated region
    $region62: #{tpu_custom_call.1} parent=1 // pred_check
      _
    $region63: #{tpu_custom_call.1} parent=1 // pred_check_branch
      %140 = sbr.rel (0) target = $region65
    $region64: #{tpu_custom_call.1} parent=1 // pred_region
      %141 = dma.done [#allocation3], 256
    $region65: #{tpu_custom_call.1} parent=1 // pred_fallthru
      _
    // Predicated region
    $region66: #{tpu_custom_call.1} parent=1 // pred_check
      _
    $region67: #{tpu_custom_call.1} parent=1 // pred_check_branch
      %143 = sbr.rel (0) target = $region69
    $region68: #{tpu_custom_call.1} parent=1 // pred_region
      %144 = dma.done [#allocation6], 2048
    $region69: #{tpu_custom_call.1} parent=1 // pred_fallthru
      _
    // Predicated region
    $region70: #{tpu_custom_call.1} parent=1 // pred_check
      _
    $region71: #{tpu_custom_call.1} parent=1 // pred_check_branch
      %146 = sbr.rel (0) target = $region73
    $region72: #{tpu_custom_call.1} parent=1 // pred_region
      %147 = dma.done [#allocation6], 2048
    $region73: #{tpu_custom_call.1} parent=1 // pred_fallthru
      _
    // Predicated region
    $region74: #{tpu_custom_call.1} parent=1 // pred_check
      _
    $region75: #{tpu_custom_call.1} parent=1 // pred_check_branch
      %149 = sbr.rel (0) target = $region77
    $region76: #{tpu_custom_call.1} parent=1 // pred_region
      %150 = dma.done [#allocation9], 2048
    $region77: #{tpu_custom_call.1} parent=1 // pred_fallthru
      _
    // Predicated region
    $region78: #{tpu_custom_call.1} parent=1 // pred_check
      _
    $region79: #{tpu_custom_call.1} parent=1 // pred_check_branch
      %152 = sbr.rel (0) target = $region81
    $region80: #{tpu_custom_call.1} parent=1 // pred_region
      %153 = dma.done [#allocation9], 2048
    $region81: #{tpu_custom_call.1} parent=1 // pred_fallthru
      _
    // Predicated region
    $region82: #{tpu_custom_call.1} parent=1 // pred_check
      _
    $region83: #{tpu_custom_call.1} parent=1 // pred_check_branch
      %155 = sbr.rel (0) target = $region85
    $region84: #{tpu_custom_call.1} parent=1 // pred_region
      %156 = dma.done [#allocation12], 2048
    $region85: #{tpu_custom_call.1} parent=1 // pred_fallthru
      _
    // Predicated region
    $region86: #{tpu_custom_call.1} parent=1 // pred_check
      _
    $region87: #{tpu_custom_call.1} parent=1 // pred_check_branch
      %158 = sbr.rel (0) target = $region89
    $region88: #{tpu_custom_call.1} parent=1 // pred_region
      %159 = dma.done [#allocation12], 2048
    $region89: #{tpu_custom_call.1} parent=1 // pred_fallthru
      _
    // Predicated region
    $region90: #{tpu_custom_call.1} parent=1 // pred_check
      _
    $region91: #{tpu_custom_call.1} parent=1 // pred_check_branch
      %161 = sbr.rel (0) target = $region93
    $region92: #{tpu_custom_call.1} parent=1 // pred_region
      %162 = dma.done [#allocation15], 8192
    $region93: #{tpu_custom_call.1} parent=1 // pred_fallthru
      _
    %v163 = vld [vmem:[#allocation2] sm:$0xff]
    %v164 = vld [vmem:[#allocation2 + $0x8] sm:$0xff]
    %v165 = vld [vmem:[#allocation5] sm:$0xff]
    %v166 = vld [vmem:[#allocation5 + $0x8] sm:$0xff]
    %v167 = vld [vmem:[#allocation5 + $0x10] sm:$0xff]
    %v168 = vld [vmem:[#allocation5 + $0x18] sm:$0xff]
    %v169 = vld [vmem:[#allocation5 + $0x20] sm:$0xff]
    %v170 = vld [vmem:[#allocation5 + $0x28] sm:$0xff]
    %v171 = vld [vmem:[#allocation5 + $0x30] sm:$0xff]
    %v172 = vld [vmem:[#allocation5 + $0x38] sm:$0xff]
    %v173 = vld [vmem:[#allocation5 + $0x40] sm:$0xff]
    %v174 = vld [vmem:[#allocation5 + $0x48] sm:$0xff]
    %v175 = vld [vmem:[#allocation5 + $0x50] sm:$0xff]
    %v176 = vld [vmem:[#allocation5 + $0x58] sm:$0xff]
    %v177 = vld [vmem:[#allocation5 + $0x60] sm:$0xff]
    %v178 = vld [vmem:[#allocation5 + $0x68] sm:$0xff]
    %v179 = vld [vmem:[#allocation5 + $0x70] sm:$0xff]
    %v180 = vld [vmem:[#allocation5 + $0x78] sm:$0xff]
    %v181 = vld [vmem:[%s2] sm:$0x1]
    %v183 = vlaneseq
    %v184 = vshrl.u32 %v183, 7
    %v185 = vsub.s32 0, %v184
    %v186 = vrot.slane %v181, %v185
    %188 = vmatprep.subr.mxu0 0.0
    %189 = vmatpush1.msra.mxu0 %v165
    %190 = vmatprep.subr.mxu0 0.0
    %191 = vmatpush1.msra.mxu0 %v166
    %192 = vmatprep.subr.mxu0 0.0
    %193 = vmatpush1.msra.mxu0 %v167
    %194 = vmatprep.subr.mxu0 0.0
    %195 = vmatpush1.msra.mxu0 %v168
    %196 = vmatprep.subr.mxu0 0.0
    %197 = vmatpush1.msra.mxu0 %v169
    %198 = vmatprep.subr.mxu0 0.0
    %199 = vmatpush1.msra.mxu0 %v170
    %200 = vmatprep.subr.mxu0 0.0
    %201 = vmatpush1.msra.mxu0 %v171
    %202 = vmatprep.subr.mxu0 0.0
    %203 = vmatpush1.msra.mxu0 %v172
    %204 = vmatprep.subr.mxu0 0.0
    %205 = vmatpush1.msra.mxu0 %v173
    %206 = vmatprep.subr.mxu0 0.0
    %207 = vmatpush1.msra.mxu0 %v174
    %208 = vmatprep.subr.mxu0 0.0
    %209 = vmatpush1.msra.mxu0 %v175
    %210 = vmatprep.subr.mxu0 0.0
    %211 = vmatpush1.msra.mxu0 %v176
    %212 = vmatprep.subr.mxu0 0.0
    %213 = vmatpush1.msra.mxu0 %v177
    %214 = vmatprep.subr.mxu0 0.0
    %215 = vmatpush1.msra.mxu0 %v178
    %216 = vmatprep.subr.mxu0 0.0
    %217 = vmatpush1.msra.mxu0 %v179
    %218 = vmatprep.subr.mxu0 0.0
    %219 = vmatpush1.msra.mxu0 %v180
    %220 = vmatprep.subr.mxu0 0.0
    %221 = vmatpush1.msra.mxu0 0.0
    %222 = vmatprep.subr.mxu0 0.0
    %223 = vmatpush1.msra.mxu0 0.0
    %224 = vmatprep.subr.mxu0 0.0
    %225 = vmatpush1.msra.mxu0 0.0
    %226 = vmatprep.subr.mxu0 0.0
    %227 = vmatpush1.msra.mxu0 0.0
    %228 = vmatprep.subr.mxu0 0.0
    %229 = vmatpush1.msra.mxu0 0.0
    %230 = vmatprep.subr.mxu0 0.0
    %231 = vmatpush1.msra.mxu0 0.0
    %232 = vmatprep.subr.mxu0 0.0
    %233 = vmatpush1.msra.mxu0 0.0
    %234 = vmatprep.subr.mxu0 0.0
    %235 = vmatpush1.msra.mxu0 0.0
    %236 = vmatprep.subr.mxu0 0.0
    %237 = vmatpush1.msra.mxu0 0.0
    %238 = vmatprep.subr.mxu0 0.0
    %239 = vmatpush1.msra.mxu0 0.0
    %240 = vmatprep.subr.mxu0 0.0
    %241 = vmatpush1.msra.mxu0 0.0
    %242 = vmatprep.subr.mxu0 0.0
    %243 = vmatpush1.msra.mxu0 0.0
    %244 = vmatprep.subr.mxu0 0.0
    %245 = vmatpush1.msra.mxu0 0.0
    %246 = vmatprep.subr.mxu0 0.0
    %247 = vmatpush1.msra.mxu0 0.0
    %248 = vmatprep.subr.mxu0 0.0
    %249 = vmatpush1.msra.mxu0 0.0
    %250 = vmatprep.subr.mxu0 0.0
    %251 = vmatpush1.msra.mxu0 0.0
    %252 = vmatprep.mubr.f32.mxu0 0.0
    %253 = vmatmul.mubr.f32.gmra.mrb[0].mxu0 %v163
    %v254 = vpop.f32.mrb[0].mxu0
    %v255 = vadd.f32 %v186, %v254
    %v256 = vpop.f32.mrb[0].mxu0
    %257 = vmatprep.mubr.f32.mxu0 0.0
    %258 = vmatmul.mubr.f32.gmra.mrb[0].mxu0 %v164
    %v259 = vpop.f32.mrb[0].mxu0
    %v260 = vadd.f32 %v186, %v259
    %v261 = vpop.f32.mrb[0].mxu0
    %262 = vdwg.mxu0
    %v263 = vmax.f32 %v255, 0.0
    %v264 = vmax.f32 %v260, 0.0
    %v265 = vld [vmem:[#allocation7] sm:$0xff]
    %v266 = vld [vmem:[#allocation7 + $0x8] sm:$0xff]
    %v267 = vld [vmem:[#allocation7 + $0x10] sm:$0xff]
    %v268 = vld [vmem:[#allocation7 + $0x18] sm:$0xff]
    %v269 = vld [vmem:[#allocation7 + $0x20] sm:$0xff]
    %v270 = vld [vmem:[#allocation7 + $0x28] sm:$0xff]
    %v271 = vld [vmem:[#allocation7 + $0x30] sm:$0xff]
    %v272 = vld [vmem:[#allocation7 + $0x38] sm:$0xff]
    %v273 = vld [vmem:[#allocation7 + $0x40] sm:$0xff]
    %v274 = vld [vmem:[#allocation7 + $0x48] sm:$0xff]
    %v275 = vld [vmem:[#allocation7 + $0x50] sm:$0xff]
    %v276 = vld [vmem:[#allocation7 + $0x58] sm:$0xff]
    %v277 = vld [vmem:[#allocation7 + $0x60] sm:$0xff]
    %v278 = vld [vmem:[#allocation7 + $0x68] sm:$0xff]
    %v279 = vld [vmem:[#allocation7 + $0x70] sm:$0xff]
    %v280 = vld [vmem:[#allocation7 + $0x78] sm:$0xff]
    %v281 = vld [vmem:[%s4] sm:$0x1]
    %v283 = vlaneseq
    %v284 = vshrl.u32 %v283, 7
    %v285 = vsub.s32 0, %v284
    %v286 = vrot.slane %v281, %v285
    %288 = vmatprep.subr.mxu0 0.0
    %289 = vmatpush1.msra.mxu0 %v265
    %290 = vmatprep.subr.mxu0 0.0
    %291 = vmatpush1.msra.mxu0 %v266
    %292 = vmatprep.subr.mxu0 0.0
    %293 = vmatpush1.msra.mxu0 %v267
    %294 = vmatprep.subr.mxu0 0.0
    %295 = vmatpush1.msra.mxu0 %v268
    %296 = vmatprep.subr.mxu0 0.0
    %297 = vmatpush1.msra.mxu0 %v269
    %298 = vmatprep.subr.mxu0 0.0
    %299 = vmatpush1.msra.mxu0 %v270
    %300 = vmatprep.subr.mxu0 0.0
    %301 = vmatpush1.msra.mxu0 %v271
    %302 = vmatprep.subr.mxu0 0.0
    %303 = vmatpush1.msra.mxu0 %v272
    %304 = vmatprep.subr.mxu0 0.0
    %305 = vmatpush1.msra.mxu0 %v273
    %306 = vmatprep.subr.mxu0 0.0
    %307 = vmatpush1.msra.mxu0 %v274
    %308 = vmatprep.subr.mxu0 0.0
    %309 = vmatpush1.msra.mxu0 %v275
    %310 = vmatprep.subr.mxu0 0.0
    %311 = vmatpush1.msra.mxu0 %v276
    %312 = vmatprep.subr.mxu0 0.0
    %313 = vmatpush1.msra.mxu0 %v277
    %314 = vmatprep.subr.mxu0 0.0
    %315 = vmatpush1.msra.mxu0 %v278
    %316 = vmatprep.subr.mxu0 0.0
    %317 = vmatpush1.msra.mxu0 %v279
    %318 = vmatprep.subr.mxu0 0.0
    %319 = vmatpush1.msra.mxu0 %v280
    %320 = vmatprep.subr.mxu0 0.0
    %321 = vmatpush1.msra.mxu0 0.0
    %322 = vmatprep.subr.mxu0 0.0
    %323 = vmatpush1.msra.mxu0 0.0
    %324 = vmatprep.subr.mxu0 0.0
    %325 = vmatpush1.msra.mxu0 0.0
    %326 = vmatprep.subr.mxu0 0.0
    %327 = vmatpush1.msra.mxu0 0.0
    %328 = vmatprep.subr.mxu0 0.0
    %329 = vmatpush1.msra.mxu0 0.0
    %330 = vmatprep.subr.mxu0 0.0
    %331 = vmatpush1.msra.mxu0 0.0
    %332 = vmatprep.subr.mxu0 0.0
    %333 = vmatpush1.msra.mxu0 0.0
    %334 = vmatprep.subr.mxu0 0.0
    %335 = vmatpush1.msra.mxu0 0.0
    %336 = vmatprep.subr.mxu0 0.0
    %337 = vmatpush1.msra.mxu0 0.0
    %338 = vmatprep.subr.mxu0 0.0
    %339 = vmatpush1.msra.mxu0 0.0
    %340 = vmatprep.subr.mxu0 0.0
    %341 = vmatpush1.msra.mxu0 0.0
    %342 = vmatprep.subr.mxu0 0.0
    %343 = vmatpush1.msra.mxu0 0.0
    %344 = vmatprep.subr.mxu0 0.0
    %345 = vmatpush1.msra.mxu0 0.0
    %346 = vmatprep.subr.mxu0 0.0
    %347 = vmatpush1.msra.mxu0 0.0
    %348 = vmatprep.subr.mxu0 0.0
    %349 = vmatpush1.msra.mxu0 0.0
    %350 = vmatprep.subr.mxu0 0.0
    %351 = vmatpush1.msra.mxu0 0.0
    %352 = vmatprep.mubr.f32.mxu0 0.0
    %353 = vmatmul.mubr.f32.gmra.mrb[0].mxu0 %v263
    %v354 = vpop.f32.mrb[0].mxu0
    %v355 = vadd.f32 %v286, %v354
    %v356 = vpop.f32.mrb[0].mxu0
    %357 = vmatprep.mubr.f32.mxu0 0.0
    %358 = vmatmul.mubr.f32.gmra.mrb[0].mxu0 %v264
    %v359 = vpop.f32.mrb[0].mxu0
    %v360 = vadd.f32 %v286, %v359
    %v361 = vpop.f32.mrb[0].mxu0
    %362 = vdwg.mxu0
    %v363 = vadd.f32 %v355, %v163
    %v364 = vadd.f32 %v360, %v164
    %v365 = vmax.f32 %v363, 0.0
    %v366 = vmax.f32 %v364, 0.0
    %v367 = vld [vmem:[#allocation8] sm:$0xff]
    %v368 = vld [vmem:[#allocation8 + $0x8] sm:$0xff]
    %v369 = vld [vmem:[#allocation8 + $0x10] sm:$0xff]
    %v370 = vld [vmem:[#allocation8 + $0x18] sm:$0xff]
    %v371 = vld [vmem:[#allocation8 + $0x20] sm:$0xff]
    %v372 = vld [vmem:[#allocation8 + $0x28] sm:$0xff]
    %v373 = vld [vmem:[#allocation8 + $0x30] sm:$0xff]
    %v374 = vld [vmem:[#allocation8 + $0x38] sm:$0xff]
    %v375 = vld [vmem:[#allocation8 + $0x40] sm:$0xff]
    %v376 = vld [vmem:[#allocation8 + $0x48] sm:$0xff]
    %v377 = vld [vmem:[#allocation8 + $0x50] sm:$0xff]
    %v378 = vld [vmem:[#allocation8 + $0x58] sm:$0xff]
    %v379 = vld [vmem:[#allocation8 + $0x60] sm:$0xff]
    %v380 = vld [vmem:[#allocation8 + $0x68] sm:$0xff]
    %v381 = vld [vmem:[#allocation8 + $0x70] sm:$0xff]
    %v382 = vld [vmem:[#allocation8 + $0x78] sm:$0xff]
    %v383 = vld [vmem:[%s6] sm:$0x1]
    %v385 = vlaneseq
    %v386 = vshrl.u32 %v385, 7
    %v387 = vsub.s32 0, %v386
    %v388 = vrot.slane %v383, %v387
    %390 = vmatprep.subr.mxu0 0.0
    %391 = vmatpush1.msra.mxu0 %v367
    %392 = vmatprep.subr.mxu0 0.0
    %393 = vmatpush1.msra.mxu0 %v368
    %394 = vmatprep.subr.mxu0 0.0
    %395 = vmatpush1.msra.mxu0 %v369
    %396 = vmatprep.subr.mxu0 0.0
    %397 = vmatpush1.msra.mxu0 %v370
    %398 = vmatprep.subr.mxu0 0.0
    %399 = vmatpush1.msra.mxu0 %v371
    %400 = vmatprep.subr.mxu0 0.0
    %401 = vmatpush1.msra.mxu0 %v372
    %402 = vmatprep.subr.mxu0 0.0
    %403 = vmatpush1.msra.mxu0 %v373
    %404 = vmatprep.subr.mxu0 0.0
    %405 = vmatpush1.msra.mxu0 %v374
    %406 = vmatprep.subr.mxu0 0.0
    %407 = vmatpush1.msra.mxu0 %v375
    %408 = vmatprep.subr.mxu0 0.0
    %409 = vmatpush1.msra.mxu0 %v376
    %410 = vmatprep.subr.mxu0 0.0
    %411 = vmatpush1.msra.mxu0 %v377
    %412 = vmatprep.subr.mxu0 0.0
    %413 = vmatpush1.msra.mxu0 %v378
    %414 = vmatprep.subr.mxu0 0.0
    %415 = vmatpush1.msra.mxu0 %v379
    %416 = vmatprep.subr.mxu0 0.0
    %417 = vmatpush1.msra.mxu0 %v380
    %418 = vmatprep.subr.mxu0 0.0
    %419 = vmatpush1.msra.mxu0 %v381
    %420 = vmatprep.subr.mxu0 0.0
    %421 = vmatpush1.msra.mxu0 %v382
    %422 = vmatprep.subr.mxu0 0.0
    %423 = vmatpush1.msra.mxu0 0.0
    %424 = vmatprep.subr.mxu0 0.0
    %425 = vmatpush1.msra.mxu0 0.0
    %426 = vmatprep.subr.mxu0 0.0
    %427 = vmatpush1.msra.mxu0 0.0
    %428 = vmatprep.subr.mxu0 0.0
    %429 = vmatpush1.msra.mxu0 0.0
    %430 = vmatprep.subr.mxu0 0.0
    %431 = vmatpush1.msra.mxu0 0.0
    %432 = vmatprep.subr.mxu0 0.0
    %433 = vmatpush1.msra.mxu0 0.0
    %434 = vmatprep.subr.mxu0 0.0
    %435 = vmatpush1.msra.mxu0 0.0
    %436 = vmatprep.subr.mxu0 0.0
    %437 = vmatpush1.msra.mxu0 0.0
    %438 = vmatprep.subr.mxu0 0.0
    %439 = vmatpush1.msra.mxu0 0.0
    %440 = vmatprep.subr.mxu0 0.0
    %441 = vmatpush1.msra.mxu0 0.0
    %442 = vmatprep.subr.mxu0 0.0
    %443 = vmatpush1.msra.mxu0 0.0
    %444 = vmatprep.subr.mxu0 0.0
    %445 = vmatpush1.msra.mxu0 0.0
    %446 = vmatprep.subr.mxu0 0.0
    %447 = vmatpush1.msra.mxu0 0.0
    %448 = vmatprep.subr.mxu0 0.0
    %449 = vmatpush1.msra.mxu0 0.0
    %450 = vmatprep.subr.mxu0 0.0
    %451 = vmatpush1.msra.mxu0 0.0
    %452 = vmatprep.subr.mxu0 0.0
    %453 = vmatpush1.msra.mxu0 0.0
    %454 = vmatprep.mubr.f32.mxu0 0.0
    %455 = vmatmul.mubr.f32.gmra.mrb[0].mxu0 %v365
    %v456 = vpop.f32.mrb[0].mxu0
    %v457 = vadd.f32 %v388, %v456
    %v458 = vpop.f32.mrb[0].mxu0
    %459 = vmatprep.mubr.f32.mxu0 0.0
    %460 = vmatmul.mubr.f32.gmra.mrb[0].mxu0 %v366
    %v461 = vpop.f32.mrb[0].mxu0
    %v462 = vadd.f32 %v388, %v461
    %v463 = vpop.f32.mrb[0].mxu0
    %464 = vdwg.mxu0
    %v465 = vmax.f32 %v457, 0.0
    %v466 = vmax.f32 %v462, 0.0
    %v467 = vld [vmem:[#allocation10] sm:$0xff]
    %v468 = vld [vmem:[#allocation10 + $0x8] sm:$0xff]
    %v469 = vld [vmem:[#allocation10 + $0x10] sm:$0xff]
    %v470 = vld [vmem:[#allocation10 + $0x18] sm:$0xff]
    %v471 = vld [vmem:[#allocation10 + $0x20] sm:$0xff]
    %v472 = vld [vmem:[#allocation10 + $0x28] sm:$0xff]
    %v473 = vld [vmem:[#allocation10 + $0x30] sm:$0xff]
    %v474 = vld [vmem:[#allocation10 + $0x38] sm:$0xff]
    %v475 = vld [vmem:[#allocation10 + $0x40] sm:$0xff]
    %v476 = vld [vmem:[#allocation10 + $0x48] sm:$0xff]
    %v477 = vld [vmem:[#allocation10 + $0x50] sm:$0xff]
    %v478 = vld [vmem:[#allocation10 + $0x58] sm:$0xff]
    %v479 = vld [vmem:[#allocation10 + $0x60] sm:$0xff]
    %v480 = vld [vmem:[#allocation10 + $0x68] sm:$0xff]
    %v481 = vld [vmem:[#allocation10 + $0x70] sm:$0xff]
    %v482 = vld [vmem:[#allocation10 + $0x78] sm:$0xff]
    %v483 = vld [vmem:[%s8] sm:$0x1]
    %v485 = vlaneseq
    %v486 = vshrl.u32 %v485, 7
    %v487 = vsub.s32 0, %v486
    %v488 = vrot.slane %v483, %v487
    %490 = vmatprep.subr.mxu0 0.0
    %491 = vmatpush1.msra.mxu0 %v467
    %492 = vmatprep.subr.mxu0 0.0
    %493 = vmatpush1.msra.mxu0 %v468
    %494 = vmatprep.subr.mxu0 0.0
    %495 = vmatpush1.msra.mxu0 %v469
    %496 = vmatprep.subr.mxu0 0.0
    %497 = vmatpush1.msra.mxu0 %v470
    %498 = vmatprep.subr.mxu0 0.0
    %499 = vmatpush1.msra.mxu0 %v471
    %500 = vmatprep.subr.mxu0 0.0
    %501 = vmatpush1.msra.mxu0 %v472
    %502 = vmatprep.subr.mxu0 0.0
    %503 = vmatpush1.msra.mxu0 %v473
    %504 = vmatprep.subr.mxu0 0.0
    %505 = vmatpush1.msra.mxu0 %v474
    %506 = vmatprep.subr.mxu0 0.0
    %507 = vmatpush1.msra.mxu0 %v475
    %508 = vmatprep.subr.mxu0 0.0
    %509 = vmatpush1.msra.mxu0 %v476
    %510 = vmatprep.subr.mxu0 0.0
    %511 = vmatpush1.msra.mxu0 %v477
    %512 = vmatprep.subr.mxu0 0.0
    %513 = vmatpush1.msra.mxu0 %v478
    %514 = vmatprep.subr.mxu0 0.0
    %515 = vmatpush1.msra.mxu0 %v479
    %516 = vmatprep.subr.mxu0 0.0
    %517 = vmatpush1.msra.mxu0 %v480
    %518 = vmatprep.subr.mxu0 0.0
    %519 = vmatpush1.msra.mxu0 %v481
    %520 = vmatprep.subr.mxu0 0.0
    %521 = vmatpush1.msra.mxu0 %v482
    %522 = vmatprep.subr.mxu0 0.0
    %523 = vmatpush1.msra.mxu0 0.0
    %524 = vmatprep.subr.mxu0 0.0
    %525 = vmatpush1.msra.mxu0 0.0
    %526 = vmatprep.subr.mxu0 0.0
    %527 = vmatpush1.msra.mxu0 0.0
    %528 = vmatprep.subr.mxu0 0.0
    %529 = vmatpush1.msra.mxu0 0.0
    %530 = vmatprep.subr.mxu0 0.0
    %531 = vmatpush1.msra.mxu0 0.0
    %532 = vmatprep.subr.mxu0 0.0
    %533 = vmatpush1.msra.mxu0 0.0
    %534 = vmatprep.subr.mxu0 0.0
    %535 = vmatpush1.msra.mxu0 0.0
    %536 = vmatprep.subr.mxu0 0.0
    %537 = vmatpush1.msra.mxu0 0.0
    %538 = vmatprep.subr.mxu0 0.0
    %539 = vmatpush1.msra.mxu0 0.0
    %540 = vmatprep.subr.mxu0 0.0
    %541 = vmatpush1.msra.mxu0 0.0
    %542 = vmatprep.subr.mxu0 0.0
    %543 = vmatpush1.msra.mxu0 0.0
    %544 = vmatprep.subr.mxu0 0.0
    %545 = vmatpush1.msra.mxu0 0.0
    %546 = vmatprep.subr.mxu0 0.0
    %547 = vmatpush1.msra.mxu0 0.0
    %548 = vmatprep.subr.mxu0 0.0
    %549 = vmatpush1.msra.mxu0 0.0
    %550 = vmatprep.subr.mxu0 0.0
    %551 = vmatpush1.msra.mxu0 0.0
    %552 = vmatprep.subr.mxu0 0.0
    %553 = vmatpush1.msra.mxu0 0.0
    %554 = vmatprep.mubr.f32.mxu0 0.0
    %555 = vmatmul.mubr.f32.gmra.mrb[0].mxu0 %v465
    %v556 = vpop.f32.mrb[0].mxu0
    %v557 = vadd.f32 %v488, %v556
    %v558 = vpop.f32.mrb[0].mxu0
    %559 = vmatprep.mubr.f32.mxu0 0.0
    %560 = vmatmul.mubr.f32.gmra.mrb[0].mxu0 %v466
    %v561 = vpop.f32.mrb[0].mxu0
    %v562 = vadd.f32 %v488, %v561
    %v563 = vpop.f32.mrb[0].mxu0
    %564 = vdwg.mxu0
    %v565 = vld [vmem:[#allocation11] sm:$0xff]
    %v566 = vld [vmem:[#allocation11 + $0x8] sm:$0xff]
    %v567 = vld [vmem:[#allocation11 + $0x10] sm:$0xff]
    %v568 = vld [vmem:[#allocation11 + $0x18] sm:$0xff]
    %v569 = vld [vmem:[#allocation11 + $0x20] sm:$0xff]
    %v570 = vld [vmem:[#allocation11 + $0x28] sm:$0xff]
    %v571 = vld [vmem:[#allocation11 + $0x30] sm:$0xff]
    %v572 = vld [vmem:[#allocation11 + $0x38] sm:$0xff]
    %v573 = vld [vmem:[#allocation11 + $0x40] sm:$0xff]
    %v574 = vld [vmem:[#allocation11 + $0x48] sm:$0xff]
    %v575 = vld [vmem:[#allocation11 + $0x50] sm:$0xff]
    %v576 = vld [vmem:[#allocation11 + $0x58] sm:$0xff]
    %v577 = vld [vmem:[#allocation11 + $0x60] sm:$0xff]
    %v578 = vld [vmem:[#allocation11 + $0x68] sm:$0xff]
    %v579 = vld [vmem:[#allocation11 + $0x70] sm:$0xff]
    %v580 = vld [vmem:[#allocation11 + $0x78] sm:$0xff]
    %v581 = vld [vmem:[%s10] sm:$0x1]
    %v583 = vlaneseq
    %v584 = vshrl.u32 %v583, 7
    %v585 = vsub.s32 0, %v584
    %v586 = vrot.slane %v581, %v585
    %588 = vmatprep.subr.mxu0 0.0
    %589 = vmatpush1.msra.mxu0 %v565
    %590 = vmatprep.subr.mxu0 0.0
    %591 = vmatpush1.msra.mxu0 %v566
    %592 = vmatprep.subr.mxu0 0.0
    %593 = vmatpush1.msra.mxu0 %v567
    %594 = vmatprep.subr.mxu0 0.0
    %595 = vmatpush1.msra.mxu0 %v568
    %596 = vmatprep.subr.mxu0 0.0
    %597 = vmatpush1.msra.mxu0 %v569
    %598 = vmatprep.subr.mxu0 0.0
    %599 = vmatpush1.msra.mxu0 %v570
    %600 = vmatprep.subr.mxu0 0.0
    %601 = vmatpush1.msra.mxu0 %v571
    %602 = vmatprep.subr.mxu0 0.0
    %603 = vmatpush1.msra.mxu0 %v572
    %604 = vmatprep.subr.mxu0 0.0
    %605 = vmatpush1.msra.mxu0 %v573
    %606 = vmatprep.subr.mxu0 0.0
    %607 = vmatpush1.msra.mxu0 %v574
    %608 = vmatprep.subr.mxu0 0.0
    %609 = vmatpush1.msra.mxu0 %v575
    %610 = vmatprep.subr.mxu0 0.0
    %611 = vmatpush1.msra.mxu0 %v576
    %612 = vmatprep.subr.mxu0 0.0
    %613 = vmatpush1.msra.mxu0 %v577
    %614 = vmatprep.subr.mxu0 0.0
    %615 = vmatpush1.msra.mxu0 %v578
    %616 = vmatprep.subr.mxu0 0.0
    %617 = vmatpush1.msra.mxu0 %v579
    %618 = vmatprep.subr.mxu0 0.0
    %619 = vmatpush1.msra.mxu0 %v580
    %620 = vmatprep.subr.mxu0 0.0
    %621 = vmatpush1.msra.mxu0 0.0
    %622 = vmatprep.subr.mxu0 0.0
    %623 = vmatpush1.msra.mxu0 0.0
    %624 = vmatprep.subr.mxu0 0.0
    %625 = vmatpush1.msra.mxu0 0.0
    %626 = vmatprep.subr.mxu0 0.0
    %627 = vmatpush1.msra.mxu0 0.0
    %628 = vmatprep.subr.mxu0 0.0
    %629 = vmatpush1.msra.mxu0 0.0
    %630 = vmatprep.subr.mxu0 0.0
    %631 = vmatpush1.msra.mxu0 0.0
    %632 = vmatprep.subr.mxu0 0.0
    %633 = vmatpush1.msra.mxu0 0.0
    %634 = vmatprep.subr.mxu0 0.0
    %635 = vmatpush1.msra.mxu0 0.0
    %636 = vmatprep.subr.mxu0 0.0
    %637 = vmatpush1.msra.mxu0 0.0
    %638 = vmatprep.subr.mxu0 0.0
    %639 = vmatpush1.msra.mxu0 0.0
    %640 = vmatprep.subr.mxu0 0.0
    %641 = vmatpush1.msra.mxu0 0.0
    %642 = vmatprep.subr.mxu0 0.0
    %643 = vmatpush1.msra.mxu0 0.0
    %644 = vmatprep.subr.mxu0 0.0
    %645 = vmatpush1.msra.mxu0 0.0
    %646 = vmatprep.subr.mxu0 0.0
    %647 = vmatpush1.msra.mxu0 0.0
    %648 = vmatprep.subr.mxu0 0.0
    %649 = vmatpush1.msra.mxu0 0.0
    %650 = vmatprep.subr.mxu0 0.0
    %651 = vmatpush1.msra.mxu0 0.0
    %652 = vmatprep.mubr.f32.mxu0 0.0
    %653 = vmatmul.mubr.f32.gmra.mrb[0].mxu0 %v365
    %v654 = vpop.f32.mrb[0].mxu0
    %v655 = vadd.f32 %v586, %v654
    %v656 = vpop.f32.mrb[0].mxu0
    %657 = vmatprep.mubr.f32.mxu0 0.0
    %658 = vmatmul.mubr.f32.gmra.mrb[0].mxu0 %v366
    %v659 = vpop.f32.mrb[0].mxu0
    %v660 = vadd.f32 %v586, %v659
    %v661 = vpop.f32.mrb[0].mxu0
    %662 = vdwg.mxu0
    %v663 = vadd.f32 %v557, %v655
    %v664 = vadd.f32 %v562, %v660
    %v665 = vmax.f32 %v663, 0.0
    %v666 = vmax.f32 %v664, 0.0
    %v667 = vld [vmem:[#allocation13] sm:$0xff]
    %v668 = vld [vmem:[#allocation13 + $0x8] sm:$0xff]
    %v669 = vld [vmem:[#allocation13 + $0x10] sm:$0xff]
    %v670 = vld [vmem:[#allocation13 + $0x18] sm:$0xff]
    %v671 = vld [vmem:[#allocation13 + $0x20] sm:$0xff]
    %v672 = vld [vmem:[#allocation13 + $0x28] sm:$0xff]
    %v673 = vld [vmem:[#allocation13 + $0x30] sm:$0xff]
    %v674 = vld [vmem:[#allocation13 + $0x38] sm:$0xff]
    %v675 = vld [vmem:[#allocation13 + $0x40] sm:$0xff]
    %v676 = vld [vmem:[#allocation13 + $0x48] sm:$0xff]
    %v677 = vld [vmem:[#allocation13 + $0x50] sm:$0xff]
    %v678 = vld [vmem:[#allocation13 + $0x58] sm:$0xff]
    %v679 = vld [vmem:[#allocation13 + $0x60] sm:$0xff]
    %v680 = vld [vmem:[#allocation13 + $0x68] sm:$0xff]
    %v681 = vld [vmem:[#allocation13 + $0x70] sm:$0xff]
    %v682 = vld [vmem:[#allocation13 + $0x78] sm:$0xff]
    %v683 = vld [vmem:[%s12] sm:$0x1]
    %v685 = vlaneseq
    %v686 = vshrl.u32 %v685, 7
    %v687 = vsub.s32 0, %v686
    %v688 = vrot.slane %v683, %v687
    %690 = vmatprep.subr.mxu0 0.0
    %691 = vmatpush1.msra.mxu0 %v667
    %692 = vmatprep.subr.mxu0 0.0
    %693 = vmatpush1.msra.mxu0 %v668
    %694 = vmatprep.subr.mxu0 0.0
    %695 = vmatpush1.msra.mxu0 %v669
    %696 = vmatprep.subr.mxu0 0.0
    %697 = vmatpush1.msra.mxu0 %v670
    %698 = vmatprep.subr.mxu0 0.0
    %699 = vmatpush1.msra.mxu0 %v671
    %700 = vmatprep.subr.mxu0 0.0
    %701 = vmatpush1.msra.mxu0 %v672
    %702 = vmatprep.subr.mxu0 0.0
    %703 = vmatpush1.msra.mxu0 %v673
    %704 = vmatprep.subr.mxu0 0.0
    %705 = vmatpush1.msra.mxu0 %v674
    %706 = vmatprep.subr.mxu0 0.0
    %707 = vmatpush1.msra.mxu0 %v675
    %708 = vmatprep.subr.mxu0 0.0
    %709 = vmatpush1.msra.mxu0 %v676
    %710 = vmatprep.subr.mxu0 0.0
    %711 = vmatpush1.msra.mxu0 %v677
    %712 = vmatprep.subr.mxu0 0.0
    %713 = vmatpush1.msra.mxu0 %v678
    %714 = vmatprep.subr.mxu0 0.0
    %715 = vmatpush1.msra.mxu0 %v679
    %716 = vmatprep.subr.mxu0 0.0
    %717 = vmatpush1.msra.mxu0 %v680
    %718 = vmatprep.subr.mxu0 0.0
    %719 = vmatpush1.msra.mxu0 %v681
    %720 = vmatprep.subr.mxu0 0.0
    %721 = vmatpush1.msra.mxu0 %v682
    %722 = vmatprep.subr.mxu0 0.0
    %723 = vmatpush1.msra.mxu0 0.0
    %724 = vmatprep.subr.mxu0 0.0
    %725 = vmatpush1.msra.mxu0 0.0
    %726 = vmatprep.subr.mxu0 0.0
    %727 = vmatpush1.msra.mxu0 0.0
    %728 = vmatprep.subr.mxu0 0.0
    %729 = vmatpush1.msra.mxu0 0.0
    %730 = vmatprep.subr.mxu0 0.0
    %731 = vmatpush1.msra.mxu0 0.0
    %732 = vmatprep.subr.mxu0 0.0
    %733 = vmatpush1.msra.mxu0 0.0
    %734 = vmatprep.subr.mxu0 0.0
    %735 = vmatpush1.msra.mxu0 0.0
    %736 = vmatprep.subr.mxu0 0.0
    %737 = vmatpush1.msra.mxu0 0.0
    %738 = vmatprep.subr.mxu0 0.0
    %739 = vmatpush1.msra.mxu0 0.0
    %740 = vmatprep.subr.mxu0 0.0
    %741 = vmatpush1.msra.mxu0 0.0
    %742 = vmatprep.subr.mxu0 0.0
    %743 = vmatpush1.msra.mxu0 0.0
    %744 = vmatprep.subr.mxu0 0.0
    %745 = vmatpush1.msra.mxu0 0.0
    %746 = vmatprep.subr.mxu0 0.0
    %747 = vmatpush1.msra.mxu0 0.0
    %748 = vmatprep.subr.mxu0 0.0
    %749 = vmatpush1.msra.mxu0 0.0
    %750 = vmatprep.subr.mxu0 0.0
    %751 = vmatpush1.msra.mxu0 0.0
    %752 = vmatprep.subr.mxu0 0.0
    %753 = vmatpush1.msra.mxu0 0.0
    %754 = vmatprep.mubr.f32.mxu0 0.0
    %755 = vmatmul.mubr.f32.gmra.mrb[0].mxu0 %v665
    %v756 = vpop.f32.mrb[0].mxu0
    %v757 = vadd.f32 %v688, %v756
    %v758 = vpop.f32.mrb[0].mxu0
    %759 = vmatprep.mubr.f32.mxu0 0.0
    %760 = vmatmul.mubr.f32.gmra.mrb[0].mxu0 %v666
    %v761 = vpop.f32.mrb[0].mxu0
    %v762 = vadd.f32 %v688, %v761
    %v763 = vpop.f32.mrb[0].mxu0
    %764 = vdwg.mxu0
    %v765 = vmax.f32 %v757, 0.0
    %v766 = vmax.f32 %v762, 0.0
    %767 = vst [vmem:[#allocation16] sm:$0xff] %v765
    %768 = vst [vmem:[#allocation16 + $0x8] sm:$0xff] %v766
    %v769 = vld [vmem:[#allocation14] sm:$0xff]
    %v770 = vld [vmem:[#allocation14 + $0x8] sm:$0xff]
    %v771 = vld [vmem:[#allocation14 + $0x10] sm:$0xff]
    %v772 = vld [vmem:[#allocation14 + $0x18] sm:$0xff]
    %v773 = vld [vmem:[#allocation14 + $0x20] sm:$0xff]
    %v774 = vld [vmem:[#allocation14 + $0x28] sm:$0xff]
    %v775 = vld [vmem:[#allocation14 + $0x30] sm:$0xff]
    %v776 = vld [vmem:[#allocation14 + $0x38] sm:$0xff]
    %v777 = vld [vmem:[#allocation14 + $0x40] sm:$0xff]
    %v778 = vld [vmem:[#allocation14 + $0x48] sm:$0xff]
    %v779 = vld [vmem:[#allocation14 + $0x50] sm:$0xff]
    %v780 = vld [vmem:[#allocation14 + $0x58] sm:$0xff]
    %v781 = vld [vmem:[#allocation14 + $0x60] sm:$0xff]
    %v782 = vld [vmem:[#allocation14 + $0x68] sm:$0xff]
    %v783 = vld [vmem:[#allocation14 + $0x70] sm:$0xff]
    %v784 = vld [vmem:[#allocation14 + $0x78] sm:$0xff]
    %v785 = vld [vmem:[#allocation14 + $0x80] sm:$0xff]
    %v786 = vld [vmem:[#allocation14 + $0x88] sm:$0xff]
    %v787 = vld [vmem:[#allocation14 + $0x90] sm:$0xff]
    %v788 = vld [vmem:[#allocation14 + $0x98] sm:$0xff]
    %v789 = vld [vmem:[#allocation14 + $0xa0] sm:$0xff]
    %v790 = vld [vmem:[#allocation14 + $0xa8] sm:$0xff]
    %v791 = vld [vmem:[#allocation14 + $0xb0] sm:$0xff]
    %v792 = vld [vmem:[#allocation14 + $0xb8] sm:$0xff]
    %v793 = vld [vmem:[#allocation14 + $0xc0] sm:$0xff]
    %v794 = vld [vmem:[#allocation14 + $0xc8] sm:$0xff]
    %v795 = vld [vmem:[#allocation14 + $0xd0] sm:$0xff]
    %v796 = vld [vmem:[#allocation14 + $0xd8] sm:$0xff]
    %v797 = vld [vmem:[#allocation14 + $0xe0] sm:$0xff]
    %v798 = vld [vmem:[#allocation14 + $0xe8] sm:$0xff]
    %v799 = vld [vmem:[#allocation14 + $0xf0] sm:$0xff]
    %v800 = vld [vmem:[#allocation14 + $0xf8] sm:$0xff]
    %v801 = vld [vmem:[#allocation14 + $0x100] sm:$0xff]
    %v802 = vld [vmem:[#allocation14 + $0x108] sm:$0xff]
    %v803 = vld [vmem:[#allocation14 + $0x110] sm:$0xff]
    %v804 = vld [vmem:[#allocation14 + $0x118] sm:$0xff]
    %v805 = vld [vmem:[#allocation14 + $0x120] sm:$0xff]
    %v806 = vld [vmem:[#allocation14 + $0x128] sm:$0xff]
    %v807 = vld [vmem:[#allocation14 + $0x130] sm:$0xff]
    %v808 = vld [vmem:[#allocation14 + $0x138] sm:$0xff]
    %v809 = vld [vmem:[#allocation14 + $0x140] sm:$0xff]
    %v810 = vld [vmem:[#allocation14 + $0x148] sm:$0xff]
    %v811 = vld [vmem:[#allocation14 + $0x150] sm:$0xff]
    %v812 = vld [vmem:[#allocation14 + $0x158] sm:$0xff]
    %v813 = vld [vmem:[#allocation14 + $0x160] sm:$0xff]
    %v814 = vld [vmem:[#allocation14 + $0x168] sm:$0xff]
    %v815 = vld [vmem:[#allocation14 + $0x170] sm:$0xff]
    %v816 = vld [vmem:[#allocation14 + $0x178] sm:$0xff]
    %v817 = vld [vmem:[#allocation14 + $0x180] sm:$0xff]
    %v818 = vld [vmem:[#allocation14 + $0x188] sm:$0xff]
    %v819 = vld [vmem:[#allocation14 + $0x190] sm:$0xff]
    %v820 = vld [vmem:[#allocation14 + $0x198] sm:$0xff]
    %v821 = vld [vmem:[#allocation14 + $0x1a0] sm:$0xff]
    %v822 = vld [vmem:[#allocation14 + $0x1a8] sm:$0xff]
    %v823 = vld [vmem:[#allocation14 + $0x1b0] sm:$0xff]
    %v824 = vld [vmem:[#allocation14 + $0x1b8] sm:$0xff]
    %v825 = vld [vmem:[#allocation14 + $0x1c0] sm:$0xff]
    %v826 = vld [vmem:[#allocation14 + $0x1c8] sm:$0xff]
    %v827 = vld [vmem:[#allocation14 + $0x1d0] sm:$0xff]
    %v828 = vld [vmem:[#allocation14 + $0x1d8] sm:$0xff]
    %v829 = vld [vmem:[#allocation14 + $0x1e0] sm:$0xff]
    %v830 = vld [vmem:[#allocation14 + $0x1e8] sm:$0xff]
    %v831 = vld [vmem:[#allocation14 + $0x1f0] sm:$0xff]
    %v832 = vld [vmem:[#allocation14 + $0x1f8] sm:$0xff]
    %v833 = vld [vmem:[%s14] sm:$0xf]
    %v835 = vlaneseq
    %v836 = vshrl.u32 %v835, 7
    %v837 = vsub.s32 0, %v836
    %v838 = vrot.slane %v833, %v837
    %v839 = vlaneseq
    %v840 = vshrl.u32 %v839, 7
    %v841 = vsub.s32 1, %v840
    %v842 = vrot.slane %v833, %v841
    %v843 = vlaneseq
    %v844 = vshrl.u32 %v843, 7
    %v845 = vsub.s32 2, %v844
    %v846 = vrot.slane %v833, %v845
    %v847 = vlaneseq
    %v848 = vshrl.u32 %v847, 7
    %v849 = vsub.s32 3, %v848
    %v850 = vrot.slane %v833, %v849
    %855 = vmatprep.subr.mxu0 %v770
    %856 = vmatpush1.msra.mxu0 %v769
    %857 = vmatprep.subr.mxu0 %v774
    %858 = vmatpush1.msra.mxu0 %v773
    %859 = vmatprep.subr.mxu0 %v778
    %860 = vmatpush1.msra.mxu0 %v777
    %861 = vmatprep.subr.mxu0 %v782
    %862 = vmatpush1.msra.mxu0 %v781
    %863 = vmatprep.subr.mxu0 %v786
    %864 = vmatpush1.msra.mxu0 %v785
    %865 = vmatprep.subr.mxu0 %v790
    %866 = vmatpush1.msra.mxu0 %v789
    %867 = vmatprep.subr.mxu0 %v794
    %868 = vmatpush1.msra.mxu0 %v793
    %869 = vmatprep.subr.mxu0 %v798
    %870 = vmatpush1.msra.mxu0 %v797
    %871 = vmatprep.subr.mxu0 %v802
    %872 = vmatpush1.msra.mxu0 %v801
    %873 = vmatprep.subr.mxu0 %v806
    %874 = vmatpush1.msra.mxu0 %v805
    %875 = vmatprep.subr.mxu0 %v810
    %876 = vmatpush1.msra.mxu0 %v809
    %877 = vmatprep.subr.mxu0 %v814
    %878 = vmatpush1.msra.mxu0 %v813
    %879 = vmatprep.subr.mxu0 %v818
    %880 = vmatpush1.msra.mxu0 %v817
    %881 = vmatprep.subr.mxu0 %v822
    %882 = vmatpush1.msra.mxu0 %v821
    %883 = vmatprep.subr.mxu0 %v826
    %884 = vmatpush1.msra.mxu0 %v825
    %885 = vmatprep.subr.mxu0 %v830
    %886 = vmatpush1.msra.mxu0 %v829
    %887 = vmatprep.subr.mxu0 0.0
    %888 = vmatpush1.msra.mxu0 0.0
    %889 = vmatprep.subr.mxu0 0.0
    %890 = vmatpush1.msra.mxu0 0.0
    %891 = vmatprep.subr.mxu0 0.0
    %892 = vmatpush1.msra.mxu0 0.0
    %893 = vmatprep.subr.mxu0 0.0
    %894 = vmatpush1.msra.mxu0 0.0
    %895 = vmatprep.subr.mxu0 0.0
    %896 = vmatpush1.msra.mxu0 0.0
    %897 = vmatprep.subr.mxu0 0.0
    %898 = vmatpush1.msra.mxu0 0.0
    %899 = vmatprep.subr.mxu0 0.0
    %900 = vmatpush1.msra.mxu0 0.0
    %901 = vmatprep.subr.mxu0 0.0
    %902 = vmatpush1.msra.mxu0 0.0
    %903 = vmatprep.subr.mxu0 0.0
    %904 = vmatpush1.msra.mxu0 0.0
    %905 = vmatprep.subr.mxu0 0.0
    %906 = vmatpush1.msra.mxu0 0.0
    %907 = vmatprep.subr.mxu0 0.0
    %908 = vmatpush1.msra.mxu0 0.0
    %909 = vmatprep.subr.mxu0 0.0
    %910 = vmatpush1.msra.mxu0 0.0
    %911 = vmatprep.subr.mxu0 0.0
    %912 = vmatpush1.msra.mxu0 0.0
    %913 = vmatprep.subr.mxu0 0.0
    %914 = vmatpush1.msra.mxu0 0.0
    %915 = vmatprep.subr.mxu0 0.0
    %916 = vmatpush1.msra.mxu0 0.0
    %917 = vmatprep.subr.mxu0 0.0
    %918 = vmatpush1.msra.mxu0 0.0
    %919 = vmatprep.mubr.f32.mxu0 0.0
    %920 = vmatmul.mubr.f32.gmra.mrb[0].mxu0 %v765
    %v921 = vpop.f32.mrb[0].mxu0
    %v922 = vadd.f32 %v838, %v921
    %v923 = vpop.f32.mrb[0].mxu0
    %v924 = vadd.f32 %v842, %v923
    %925 = vmatprep.mubr.f32.mxu0 0.0
    %926 = vmatmul.mubr.f32.gmra.mrb[0].mxu0 %v766
    %v927 = vpop.f32.mrb[0].mxu0
    %v928 = vadd.f32 %v838, %v927
    %v929 = vpop.f32.mrb[0].mxu0
    %v930 = vadd.f32 %v842, %v929
    %931 = vdwg.mxu0
    %932 = vmatprep.subr.mxu0 %v772
    %933 = vmatpush1.msra.mxu0 %v771
    %934 = vmatprep.subr.mxu0 %v776
    %935 = vmatpush1.msra.mxu0 %v775
    %936 = vmatprep.subr.mxu0 %v780
    %937 = vmatpush1.msra.mxu0 %v779
    %938 = vmatprep.subr.mxu0 %v784
    %939 = vmatpush1.msra.mxu0 %v783
    %940 = vmatprep.subr.mxu0 %v788
    %941 = vmatpush1.msra.mxu0 %v787
    %942 = vmatprep.subr.mxu0 %v792
    %943 = vmatpush1.msra.mxu0 %v791
    %944 = vmatprep.subr.mxu0 %v796
    %945 = vmatpush1.msra.mxu0 %v795
    %946 = vmatprep.subr.mxu0 %v800
    %947 = vmatpush1.msra.mxu0 %v799
    %948 = vmatprep.subr.mxu0 %v804
    %949 = vmatpush1.msra.mxu0 %v803
    %950 = vmatprep.subr.mxu0 %v808
    %951 = vmatpush1.msra.mxu0 %v807
    %952 = vmatprep.subr.mxu0 %v812
    %953 = vmatpush1.msra.mxu0 %v811
    %954 = vmatprep.subr.mxu0 %v816
    %955 = vmatpush1.msra.mxu0 %v815
    %956 = vmatprep.subr.mxu0 %v820
    %957 = vmatpush1.msra.mxu0 %v819
    %958 = vmatprep.subr.mxu0 %v824
    %959 = vmatpush1.msra.mxu0 %v823
    %960 = vmatprep.subr.mxu0 %v828
    %961 = vmatpush1.msra.mxu0 %v827
    %962 = vmatprep.subr.mxu0 %v832
    %963 = vmatpush1.msra.mxu0 %v831
    %964 = vmatprep.subr.mxu0 0.0
    %965 = vmatpush1.msra.mxu0 0.0
    %966 = vmatprep.subr.mxu0 0.0
    %967 = vmatpush1.msra.mxu0 0.0
    %968 = vmatprep.subr.mxu0 0.0
    %969 = vmatpush1.msra.mxu0 0.0
    %970 = vmatprep.subr.mxu0 0.0
    %971 = vmatpush1.msra.mxu0 0.0
    %972 = vmatprep.subr.mxu0 0.0
    %973 = vmatpush1.msra.mxu0 0.0
    %974 = vmatprep.subr.mxu0 0.0
    %975 = vmatpush1.msra.mxu0 0.0
    %976 = vmatprep.subr.mxu0 0.0
    %977 = vmatpush1.msra.mxu0 0.0
    %978 = vmatprep.subr.mxu0 0.0
    %979 = vmatpush1.msra.mxu0 0.0
    %980 = vmatprep.subr.mxu0 0.0
    %981 = vmatpush1.msra.mxu0 0.0
    %982 = vmatprep.subr.mxu0 0.0
    %983 = vmatpush1.msra.mxu0 0.0
    %984 = vmatprep.subr.mxu0 0.0
    %985 = vmatpush1.msra.mxu0 0.0
    %986 = vmatprep.subr.mxu0 0.0
    %987 = vmatpush1.msra.mxu0 0.0
    %988 = vmatprep.subr.mxu0 0.0
    %989 = vmatpush1.msra.mxu0 0.0
    %990 = vmatprep.subr.mxu0 0.0
    %991 = vmatpush1.msra.mxu0 0.0
    %992 = vmatprep.subr.mxu0 0.0
    %993 = vmatpush1.msra.mxu0 0.0
    %994 = vmatprep.subr.mxu0 0.0
    %995 = vmatpush1.msra.mxu0 0.0
    %996 = vmatprep.mubr.f32.mxu0 0.0
    %997 = vmatmul.mubr.f32.gmra.mrb[0].mxu0 %v765
    %v998 = vpop.f32.mrb[0].mxu0
    %v999 = vadd.f32 %v846, %v998
    %v1000 = vpop.f32.mrb[0].mxu0
    %v1001 = vadd.f32 %v850, %v1000
    %1002 = vmatprep.mubr.f32.mxu0 0.0
    %1003 = vmatmul.mubr.f32.gmra.mrb[0].mxu0 %v766
    %v1004 = vpop.f32.mrb[0].mxu0
    %v1005 = vadd.f32 %v846, %v1004
    %v1006 = vpop.f32.mrb[0].mxu0
    %v1007 = vadd.f32 %v850, %v1006
    %1008 = vdwg.mxu0
    %v1009 = vpack.c.bf16 %v928, %v922
    %v1010 = vpack.c.bf16 %v930, %v924
    %v1011 = vpack.c.bf16 %v1005, %v999
    %v1012 = vpack.c.bf16 %v1007, %v1001
    %v1017 = vunpack.c.l.b16 %v1009
    %v1018 = vunpack.c.l.b16 %v1010
    %v1019 = vunpack.c.l.b16 %v1011
    %v1020 = vunpack.c.l.b16 %v1012
    %v1021 = vunpack.c.h.b16 %v1009
    %v1022 = vunpack.c.h.b16 %v1010
    %v1023 = vunpack.c.h.b16 %v1011
    %v1024 = vunpack.c.h.b16 %v1012
    %v1025 = vpack.c.b16 %v1018, %v1017
    %v1026 = vpack.c.b16 %v1020, %v1019
    %v1027 = vpack.c.b16 %v1022, %v1021
    %v1028 = vpack.c.b16 %v1024, %v1023
    %1033 = vst [vmem:[#allocation17] sm:$0xff] %v1025
    %1034 = vst [vmem:[#allocation17 + $0x8] sm:$0xff] %v1026
    %1035 = vst [vmem:[#allocation17 + $0x10] sm:$0xff] %v1027
    %1036 = vst [vmem:[#allocation17 + $0x18] sm:$0xff] %v1028
    // Predicated region
    $region94: #{tpu_custom_call.1} parent=1 // pred_check
      _
    $region95: #{tpu_custom_call.1} parent=1 // pred_check_branch
      %1038 = sbr.rel (0) target = $region97
    $region96: #{tpu_custom_call.1} parent=1 // pred_region
      %s1040 = ssub.s32 256, 256
      %1041 = vsyncadd [#allocation4], %s1040
      %s1042 = sshll.u32 [#allocation16], 4
      %s1043 = int_to_ptr.vmem [resolvable:$true] %s1042
      %1048 = dma.vmem_to_hbm [thread:$0]  %s1043, 256, %s15, [#allocation4], 128, 128, 8
    $region97: #{tpu_custom_call.1} parent=1 // pred_fallthru
      _
    // Predicated region
    $region98: #{tpu_custom_call.1} parent=1 // pred_check
      _
    $region99: #{tpu_custom_call.1} parent=1 // pred_check_branch
      %1050 = sbr.rel (0) target = $region101
    $region100: #{tpu_custom_call.1} parent=1 // pred_region
      %s1052 = ssub.s32 512, 512
      %1053 = vsyncadd [#allocation18], %s1052
      %s1054 = sshll.u32 [#allocation17], 4
      %s1055 = int_to_ptr.vmem [resolvable:$true] %s1054
      %1060 = dma.vmem_to_hbm [thread:$0]  %s1055, 512, %s16, [#allocation18], 256, 256, 16
    $region101: #{tpu_custom_call.1} parent=1 // pred_fallthru
      _
    // Predicated region
    $region102: #{tpu_custom_call.1} parent=1 // pred_check
      _
    $region103: #{tpu_custom_call.1} parent=1 // pred_check_branch
      %1062 = sbr.rel (0) target = $region105
    $region104: #{tpu_custom_call.1} parent=1 // pred_region
      %1063 = dma.done [#allocation4], 256
    $region105: #{tpu_custom_call.1} parent=1 // pred_fallthru
      _
    // Predicated region
    $region106: #{tpu_custom_call.1} parent=1 // pred_check
      _
    $region107: #{tpu_custom_call.1} parent=1 // pred_check_branch
      %1065 = sbr.rel (0) target = $region109
    $region108: #{tpu_custom_call.1} parent=1 // pred_region
      %1066 = dma.done [#allocation18], 512
    $region109: #{tpu_custom_call.1} parent=1 // pred_fallthru
      _
    %1067 = vsyncpa [#allocation3], 1
    %1068 = vsyncpa [#allocation6], 1
    %1069 = vsyncpa [#allocation9], 1
    %1070 = vsyncpa [#allocation12], 1
    %1071 = vsyncpa [#allocation15], 1
    %1072 = vsyncpa [#allocation4], 1
    %1073 = vsyncpa [#allocation18], 1

</llo_original>
